<compile_context>
chip_gen: v6e
topology: v6e:2x2x1
jax: 0.10.0
libtpu: 0.0.40
codegen_flags: <defaults>
</compile_context>

<pallas_src>
from functools import partial

import jax
import jax.numpy as jnp
from jax import lax
from jax.experimental import pallas as pl
from jax.experimental.pallas import tpu as pltpu


# ----------------------------- fused kernel ----------------------------------

def fused_attention_kernel(x_ref, wqkv_ref, wproj_ref, bproj_ref, o_ref,
                           qkv_scr, ctx_scr, *, num_heads, scale, mxu_dtype):
    # x_ref: (1, N, C)   wqkv_ref: (C, 3C)   wproj_ref: (C, C)   bproj_ref: (1, C)
    # qkv_scr: VMEM (N, 3C) f32    ctx_scr: VMEM (N, C) f32
    x = x_ref[0]                                            # (N, C)
    C = x_ref.shape[-1]
    hd = C // num_heads

    # ---- qkv = x @ W_qkv  (qkv_bias=False), kept in VMEM ----
    qkv_scr[...] = jnp.dot(x.astype(mxu_dtype),
                           wqkv_ref[...].astype(mxu_dtype),
                           preferred_element_type=jnp.float32)

    # ---- per-head attention, heads statically unrolled (static ref slices) ----
    for h in range(num_heads):
        lo = h * hd
        q = qkv_scr[:, lo:lo + hd]                          # (N, hd)
        k = qkv_scr[:, C + lo:C + lo + hd]                  # (N, hd)
        v = qkv_scr[:, 2 * C + lo:2 * C + lo + hd]          # (N, hd)

        # contract on head_dim directly (no explicit k transpose)
        s = lax.dot_general(q.astype(mxu_dtype), k.astype(mxu_dtype),
                            (((1,), (1,)), ((), ())),
                            preferred_element_type=jnp.float32) * scale  # (N, N)

        m = jnp.max(s, axis=-1, keepdims=True)
        e = jnp.exp(s - m)
        inv = pl.reciprocal(jnp.sum(e, axis=-1, keepdims=True), approx=True)
        p = e * inv                                         # softmax (f32 stats)

        # head-contiguous write -> proj consumes (N, C) without any transpose
        ctx_scr[:, lo:lo + hd] = jnp.dot(p.astype(mxu_dtype),
                                         v.astype(mxu_dtype),
                                         preferred_element_type=jnp.float32)

    # ---- out = ctx @ W_proj + b_proj ----
    o_ref[0] = (jnp.dot(ctx_scr[...].astype(mxu_dtype),
                        wproj_ref[...].astype(mxu_dtype),
                        preferred_element_type=jnp.float32)
                + bproj_ref[...]).astype(o_ref.dtype)


# ----------------------------- wrapper ----------------------------------------

def attention_forward(x, w_qkv, w_proj, b_proj, num_heads,
                      *, mxu_dtype=jnp.float32):
    B, N, C = x.shape
    hd = C // num_heads
    scale = hd ** -0.5

    kernel = partial(fused_attention_kernel,
                     num_heads=num_heads, scale=scale, mxu_dtype=mxu_dtype)

    return pl.pallas_call(
        kernel,
        out_shape=jax.ShapeDtypeStruct((B, N, C), x.dtype),
        grid=(B,),
        in_specs=[
            pl.BlockSpec((1, N, C), lambda b: (b, 0, 0)),       # x (per batch)
            pl.BlockSpec((C, 3 * C), lambda b: (0, 0)),         # W_qkv (resident)
            pl.BlockSpec((C, C), lambda b: (0, 0)),             # W_proj (resident)
            pl.BlockSpec((1, C), lambda b: (0, 0)),             # b_proj (resident)
        ],
        out_specs=pl.BlockSpec((1, N, C), lambda b: (b, 0, 0)),
        scratch_shapes=[
            pltpu.VMEM((N, 3 * C), jnp.float32),                # qkv scratch
            pltpu.VMEM((N, C), jnp.float32),                    # head-contig context
        ],
        compiler_params=pltpu.CompilerParams(
            dimension_semantics=("parallel",)),
    )(x, w_qkv, w_proj, b_proj)


# -------------------------- pure-JAX reference --------------------------------

def attention_reference(x, w_qkv, w_proj, b_proj, num_heads):
    B, N, C = x.shape
    hd = C // num_heads
    scale = hd ** -0.5
    qkv = (x @ w_qkv).reshape(B, N, 3, num_heads, hd).transpose(2, 0, 3, 1, 4)
    q, k, v = qkv[0], qkv[1], qkv[2]
    attn = jnp.einsum("bhnd,bhmd->bhnm", q, k) * scale
    attn = jax.nn.softmax(attn, axis=-1)
    o = jnp.einsum("bhnm,bhmd->bhnd", attn, v)
    o = o.transpose(0, 2, 1, 3).reshape(B, N, C)
    return o @ w_proj + b_proj


# ------------------------------- main ------------------------------------------

if __name__ == "__main__":
    B, N, C = 2, 8, 32
    num_heads = 8

    key = jax.random.PRNGKey(0)
    kx, kq, kp, kb = jax.random.split(key, 4)

    x = jax.random.normal(kx, (B, N, C), dtype=jnp.float32)
    # nn.Linear(dim, dim*3, bias=False): weight (3C, C) -> stored transposed (C, 3C)
    w_qkv = jax.random.normal(kq, (C, 3 * C), dtype=jnp.float32) * 0.05
    # nn.Linear(dim, dim): weight (C, C) -> stored transposed, plus bias (C,)
    w_proj = jax.random.normal(kp, (C, C), dtype=jnp.float32) * 0.05
    b_proj = jax.random.normal(kb, (1, C), dtype=jnp.float32) * 0.05

    out = attention_forward(x, w_qkv, w_proj, b_proj, num_heads)
    out = jax.block_until_ready(out)

    ref = attention_reference(x, w_qkv, w_proj, b_proj, num_heads)
    assert out.shape == (B, N, C)
    # tolerance loosened slightly vs 1e-4 because the softmax normalization uses
    # the EUP approximate reciprocal (perf feedback); all other math is f32.
    assert jnp.allclose(out, ref, atol=2e-3, rtol=2e-3), "mismatch vs JAX reference"

    print("KERNEL_OK")
</pallas_src>

<mosaic_0001>
module attributes {stable_mosaic.version = 11 : i64} {
  func.func @fused_attention_kernel(%arg0: i32, %arg1: memref<1x8x32xf32, #tpu.memory_space<vmem>>, %arg2: memref<32x96xf32, #tpu.memory_space<vmem>>, %arg3: memref<32x32xf32, #tpu.memory_space<vmem>>, %arg4: memref<1x32xf32, #tpu.memory_space<vmem>>, %arg5: memref<1x8x32xf32, #tpu.memory_space<vmem>>, %arg6: memref<8x96xf32, #tpu.memory_space<vmem>>, %arg7: memref<8x32xf32, #tpu.memory_space<vmem>>) attributes {dimension_semantics = [#tpu.dimension_semantics<parallel>], iteration_bounds = array<i64: 2>, scalar_prefetch = 0 : i64, scratch_operands = 2 : i64, tpu.core_type = #tpu.core_type<tc>, window_params = [{transform_indices = @transform_0, window_bounds = array<i64: 1, 8, 32>}, {pipeline_mode = #tpu.pipeline_mode<synchronous>, transform_indices = @transform_1, window_bounds = array<i64: 32, 96>}, {pipeline_mode = #tpu.pipeline_mode<synchronous>, transform_indices = @transform_2, window_bounds = array<i64: 32, 32>}, {pipeline_mode = #tpu.pipeline_mode<synchronous>, transform_indices = @transform_3, window_bounds = array<i64: 1, 32>}, {transform_indices = @transform_4, window_bounds = array<i64: 1, 8, 32>}]} {
    %c0 = arith.constant 0 : index
    %c0_0 = arith.constant 0 : index
    %c0_1 = arith.constant 0 : index
    %0 = vector.load %arg1[%c0, %c0_0, %c0_1] : memref<1x8x32xf32, #tpu.memory_space<vmem>>, vector<1x8x32xf32>
    %1 = vector.shape_cast %0 : vector<1x8x32xf32> to vector<8x32xf32>
    %c0_2 = arith.constant 0 : index
    %c0_3 = arith.constant 0 : index
    %2 = vector.load %arg2[%c0_2, %c0_3] : memref<32x96xf32, #tpu.memory_space<vmem>>, vector<32x96xf32>
    %cst = arith.constant dense<0.000000e+00> : vector<8x96xf32>
    %3 = tpu.matmul %1, %2, %cst {dimension_numbers = #tpu.dot_dimension_numbers<[1], [0], [0], [1], [0, 0, 1, 1], [], []>} : vector<8x32xf32>, vector<32x96xf32>, vector<8x96xf32> -> vector<8x96xf32>
    %c0_4 = arith.constant 0 : index
    %c0_5 = arith.constant 0 : index
    %4 = vector.load %arg6[%c0_4, %c0_5] : memref<8x96xf32, #tpu.memory_space<vmem>>, vector<8x96xf32>
    tpu.vector_store %arg6[%c0_4, %c0_5], %3 {strides = array<i32>} : memref<8x96xf32, #tpu.memory_space<vmem>>, vector<8x96xf32>,
    %c0_6 = arith.constant 0 : index
    %c0_7 = arith.constant 0 : index
    %5 = vector.load %arg6[%c0_6, %c0_7] : memref<8x96xf32, #tpu.memory_space<vmem>>, vector<8x4xf32>
    %c0_8 = arith.constant 0 : index
    %c32 = arith.constant 32 : index
    %6 = vector.load %arg6[%c0_8, %c32] : memref<8x96xf32, #tpu.memory_space<vmem>>, vector<8x4xf32>
    %c0_9 = arith.constant 0 : index
    %c64 = arith.constant 64 : index
    %7 = vector.load %arg6[%c0_9, %c64] : memref<8x96xf32, #tpu.memory_space<vmem>>, vector<8x4xf32>
    %cst_10 = arith.constant dense<0.000000e+00> : vector<8x8xf32>
    %8 = tpu.matmul %5, %6, %cst_10 {dimension_numbers = #tpu.dot_dimension_numbers<[1], [1], [0], [0], [0, 0, 1, 0], [], []>} : vector<8x4xf32>, vector<8x4xf32>, vector<8x8xf32> -> vector<8x8xf32>
    %cst_11 = arith.constant 5.000000e-01 : f32
    %9 = vector.broadcast %cst_11 : f32 to vector<8x8xf32>
    %10 = arith.mulf %8, %9 : vector<8x8xf32>
    %cst_12 = arith.constant dense<0xFF800000> : vector<8xf32>
    %11 = vector.multi_reduction <maximumf>, %10, %cst_12 [1] : vector<8x8xf32> to vector<8xf32>
    %12 = vector.shape_cast %11 : vector<8xf32> to vector<8x1xf32>
    %13 = vector.broadcast %12 : vector<8x1xf32> to vector<8x8xf32>
    %14 = arith.subf %10, %13 : vector<8x8xf32>
    %15 = math.exp %14 : vector<8x8xf32>
    %cst_13 = arith.constant dense<0.000000e+00> : vector<8xf32>
    %16 = vector.multi_reduction <add>, %15, %cst_13 [1] : vector<8x8xf32> to vector<8xf32>
    %17 = vector.shape_cast %16 : vector<8xf32> to vector<8x1xf32>
    %18 = tpu.reciprocal %17 {approx = true} : vector<8x1xf32> -> vector<8x1xf32>
    %19 = vector.broadcast %18 : vector<8x1xf32> to vector<8x8xf32>
    %20 = arith.mulf %15, %19 : vector<8x8xf32>
    %cst_14 = arith.constant dense<0.000000e+00> : vector<8x4xf32>
    %21 = tpu.matmul %20, %7, %cst_14 {dimension_numbers = #tpu.dot_dimension_numbers<[1], [0], [0], [1], [0, 0, 1, 1], [], []>} : vector<8x8xf32>, vector<8x4xf32>, vector<8x4xf32> -> vector<8x4xf32>
    %c0_15 = arith.constant 0 : index
    %c0_16 = arith.constant 0 : index
    %22 = vector.load %arg7[%c0_15, %c0_16] : memref<8x32xf32, #tpu.memory_space<vmem>>, vector<8x4xf32>
    tpu.vector_store %arg7[%c0_15, %c0_16], %21 {strides = array<i32>} : memref<8x32xf32, #tpu.memory_space<vmem>>, vector<8x4xf32>,
    %c0_17 = arith.constant 0 : index
    %c4 = arith.constant 4 : index
    %23 = vector.load %arg6[%c0_17, %c4] : memref<8x96xf32, #tpu.memory_space<vmem>>, vector<8x4xf32>
    %c0_18 = arith.constant 0 : index
    %c36 = arith.constant 36 : index
    %24 = vector.load %arg6[%c0_18, %c36] : memref<8x96xf32, #tpu.memory_space<vmem>>, vector<8x4xf32>
    %c0_19 = arith.constant 0 : index
    %c68 = arith.constant 68 : index
    %25 = vector.load %arg6[%c0_19, %c68] : memref<8x96xf32, #tpu.memory_space<vmem>>, vector<8x4xf32>
    %cst_20 = arith.constant dense<0.000000e+00> : vector<8x8xf32>
    %26 = tpu.matmul %23, %24, %cst_20 {dimension_numbers = #tpu.dot_dimension_numbers<[1], [1], [0], [0], [0, 0, 1, 0], [], []>} : vector<8x4xf32>, vector<8x4xf32>, vector<8x8xf32> -> vector<8x8xf32>
    %cst_21 = arith.constant 5.000000e-01 : f32
    %27 = vector.broadcast %cst_21 : f32 to vector<8x8xf32>
    %28 = arith.mulf %26, %27 : vector<8x8xf32>
    %cst_22 = arith.constant dense<0xFF800000> : vector<8xf32>
    %29 = vector.multi_reduction <maximumf>, %28, %cst_22 [1] : vector<8x8xf32> to vector<8xf32>
    %30 = vector.shape_cast %29 : vector<8xf32> to vector<8x1xf32>
    %31 = vector.broadcast %30 : vector<8x1xf32> to vector<8x8xf32>
    %32 = arith.subf %28, %31 : vector<8x8xf32>
    %33 = math.exp %32 : vector<8x8xf32>
    %cst_23 = arith.constant dense<0.000000e+00> : vector<8xf32>
    %34 = vector.multi_reduction <add>, %33, %cst_23 [1] : vector<8x8xf32> to vector<8xf32>
    %35 = vector.shape_cast %34 : vector<8xf32> to vector<8x1xf32>
    %36 = tpu.reciprocal %35 {approx = true} : vector<8x1xf32> -> vector<8x1xf32>
    %37 = vector.broadcast %36 : vector<8x1xf32> to vector<8x8xf32>
    %38 = arith.mulf %33, %37 : vector<8x8xf32>
    %cst_24 = arith.constant dense<0.000000e+00> : vector<8x4xf32>
    %39 = tpu.matmul %38, %25, %cst_24 {dimension_numbers = #tpu.dot_dimension_numbers<[1], [0], [0], [1], [0, 0, 1, 1], [], []>} : vector<8x8xf32>, vector<8x4xf32>, vector<8x4xf32> -> vector<8x4xf32>
    %c0_25 = arith.constant 0 : index
    %c4_26 = arith.constant 4 : index
    %40 = vector.load %arg7[%c0_25, %c4_26] : memref<8x32xf32, #tpu.memory_space<vmem>>, vector<8x4xf32>
    tpu.vector_store %arg7[%c0_25, %c4_26], %39 {strides = array<i32>} : memref<8x32xf32, #tpu.memory_space<vmem>>, vector<8x4xf32>,
    %c0_27 = arith.constant 0 : index
    %c8 = arith.constant 8 : index
    %41 = vector.load %arg6[%c0_27, %c8] : memref<8x96xf32, #tpu.memory_space<vmem>>, vector<8x4xf32>
    %c0_28 = arith.constant 0 : index
    %c40 = arith.constant 40 : index
    %42 = vector.load %arg6[%c0_28, %c40] : memref<8x96xf32, #tpu.memory_space<vmem>>, vector<8x4xf32>
    %c0_29 = arith.constant 0 : index
    %c72 = arith.constant 72 : index
    %43 = vector.load %arg6[%c0_29, %c72] : memref<8x96xf32, #tpu.memory_space<vmem>>, vector<8x4xf32>
    %cst_30 = arith.constant dense<0.000000e+00> : vector<8x8xf32>
    %44 = tpu.matmul %41, %42, %cst_30 {dimension_numbers = #tpu.dot_dimension_numbers<[1], [1], [0], [0], [0, 0, 1, 0], [], []>} : vector<8x4xf32>, vector<8x4xf32>, vector<8x8xf32> -> vector<8x8xf32>
    %cst_31 = arith.constant 5.000000e-01 : f32
    %45 = vector.broadcast %cst_31 : f32 to vector<8x8xf32>
    %46 = arith.mulf %44, %45 : vector<8x8xf32>
    %cst_32 = arith.constant dense<0xFF800000> : vector<8xf32>
    %47 = vector.multi_reduction <maximumf>, %46, %cst_32 [1] : vector<8x8xf32> to vector<8xf32>
    %48 = vector.shape_cast %47 : vector<8xf32> to vector<8x1xf32>
    %49 = vector.broadcast %48 : vector<8x1xf32> to vector<8x8xf32>
    %50 = arith.subf %46, %49 : vector<8x8xf32>
    %51 = math.exp %50 : vector<8x8xf32>
    %cst_33 = arith.constant dense<0.000000e+00> : vector<8xf32>
    %52 = vector.multi_reduction <add>, %51, %cst_33 [1] : vector<8x8xf32> to vector<8xf32>
    %53 = vector.shape_cast %52 : vector<8xf32> to vector<8x1xf32>
    %54 = tpu.reciprocal %53 {approx = true} : vector<8x1xf32> -> vector<8x1xf32>
    %55 = vector.broadcast %54 : vector<8x1xf32> to vector<8x8xf32>
    %56 = arith.mulf %51, %55 : vector<8x8xf32>
    %cst_34 = arith.constant dense<0.000000e+00> : vector<8x4xf32>
    %57 = tpu.matmul %56, %43, %cst_34 {dimension_numbers = #tpu.dot_dimension_numbers<[1], [0], [0], [1], [0, 0, 1, 1], [], []>} : vector<8x8xf32>, vector<8x4xf32>, vector<8x4xf32> -> vector<8x4xf32>
    %c0_35 = arith.constant 0 : index
    %c8_36 = arith.constant 8 : index
    %58 = vector.load %arg7[%c0_35, %c8_36] : memref<8x32xf32, #tpu.memory_space<vmem>>, vector<8x4xf32>
    tpu.vector_store %arg7[%c0_35, %c8_36], %57 {strides = array<i32>} : memref<8x32xf32, #tpu.memory_space<vmem>>, vector<8x4xf32>,
    %c0_37 = arith.constant 0 : index
    %c12 = arith.constant 12 : index
    %59 = vector.load %arg6[%c0_37, %c12] : memref<8x96xf32, #tpu.memory_space<vmem>>, vector<8x4xf32>
    %c0_38 = arith.constant 0 : index
    %c44 = arith.constant 44 : index
    %60 = vector.load %arg6[%c0_38, %c44] : memref<8x96xf32, #tpu.memory_space<vmem>>, vector<8x4xf32>
    %c0_39 = arith.constant 0 : index
    %c76 = arith.constant 76 : index
    %61 = vector.load %arg6[%c0_39, %c76] : memref<8x96xf32, #tpu.memory_space<vmem>>, vector<8x4xf32>
    %cst_40 = arith.constant dense<0.000000e+00> : vector<8x8xf32>
    %62 = tpu.matmul %59, %60, %cst_40 {dimension_numbers = #tpu.dot_dimension_numbers<[1], [1], [0], [0], [0, 0, 1, 0], [], []>} : vector<8x4xf32>, vector<8x4xf32>, vector<8x8xf32> -> vector<8x8xf32>
    %cst_41 = arith.constant 5.000000e-01 : f32
    %63 = vector.broadcast %cst_41 : f32 to vector<8x8xf32>
    %64 = arith.mulf %62, %63 : vector<8x8xf32>
    %cst_42 = arith.constant dense<0xFF800000> : vector<8xf32>
    %65 = vector.multi_reduction <maximumf>, %64, %cst_42 [1] : vector<8x8xf32> to vector<8xf32>
    %66 = vector.shape_cast %65 : vector<8xf32> to vector<8x1xf32>
    %67 = vector.broadcast %66 : vector<8x1xf32> to vector<8x8xf32>
    %68 = arith.subf %64, %67 : vector<8x8xf32>
    %69 = math.exp %68 : vector<8x8xf32>
    %cst_43 = arith.constant dense<0.000000e+00> : vector<8xf32>
    %70 = vector.multi_reduction <add>, %69, %cst_43 [1] : vector<8x8xf32> to vector<8xf32>
    %71 = vector.shape_cast %70 : vector<8xf32> to vector<8x1xf32>
    %72 = tpu.reciprocal %71 {approx = true} : vector<8x1xf32> -> vector<8x1xf32>
    %73 = vector.broadcast %72 : vector<8x1xf32> to vector<8x8xf32>
    %74 = arith.mulf %69, %73 : vector<8x8xf32>
    %cst_44 = arith.constant dense<0.000000e+00> : vector<8x4xf32>
    %75 = tpu.matmul %74, %61, %cst_44 {dimension_numbers = #tpu.dot_dimension_numbers<[1], [0], [0], [1], [0, 0, 1, 1], [], []>} : vector<8x8xf32>, vector<8x4xf32>, vector<8x4xf32> -> vector<8x4xf32>
    %c0_45 = arith.constant 0 : index
    %c12_46 = arith.constant 12 : index
    %76 = vector.load %arg7[%c0_45, %c12_46] : memref<8x32xf32, #tpu.memory_space<vmem>>, vector<8x4xf32>
    tpu.vector_store %arg7[%c0_45, %c12_46], %75 {strides = array<i32>} : memref<8x32xf32, #tpu.memory_space<vmem>>, vector<8x4xf32>,
    %c0_47 = arith.constant 0 : index
    %c16 = arith.constant 16 : index
    %77 = vector.load %arg6[%c0_47, %c16] : memref<8x96xf32, #tpu.memory_space<vmem>>, vector<8x4xf32>
    %c0_48 = arith.constant 0 : index
    %c48 = arith.constant 48 : index
    %78 = vector.load %arg6[%c0_48, %c48] : memref<8x96xf32, #tpu.memory_space<vmem>>, vector<8x4xf32>
    %c0_49 = arith.constant 0 : index
    %c80 = arith.constant 80 : index
    %79 = vector.load %arg6[%c0_49, %c80] : memref<8x96xf32, #tpu.memory_space<vmem>>, vector<8x4xf32>
    %cst_50 = arith.constant dense<0.000000e+00> : vector<8x8xf32>
    %80 = tpu.matmul %77, %78, %cst_50 {dimension_numbers = #tpu.dot_dimension_numbers<[1], [1], [0], [0], [0, 0, 1, 0], [], []>} : vector<8x4xf32>, vector<8x4xf32>, vector<8x8xf32> -> vector<8x8xf32>
    %cst_51 = arith.constant 5.000000e-01 : f32
    %81 = vector.broadcast %cst_51 : f32 to vector<8x8xf32>
    %82 = arith.mulf %80, %81 : vector<8x8xf32>
    %cst_52 = arith.constant dense<0xFF800000> : vector<8xf32>
    %83 = vector.multi_reduction <maximumf>, %82, %cst_52 [1] : vector<8x8xf32> to vector<8xf32>
    %84 = vector.shape_cast %83 : vector<8xf32> to vector<8x1xf32>
    %85 = vector.broadcast %84 : vector<8x1xf32> to vector<8x8xf32>
    %86 = arith.subf %82, %85 : vector<8x8xf32>
    %87 = math.exp %86 : vector<8x8xf32>
    %cst_53 = arith.constant dense<0.000000e+00> : vector<8xf32>
    %88 = vector.multi_reduction <add>, %87, %cst_53 [1] : vector<8x8xf32> to vector<8xf32>
    %89 = vector.shape_cast %88 : vector<8xf32> to vector<8x1xf32>
    %90 = tpu.reciprocal %89 {approx = true} : vector<8x1xf32> -> vector<8x1xf32>
    %91 = vector.broadcast %90 : vector<8x1xf32> to vector<8x8xf32>
    %92 = arith.mulf %87, %91 : vector<8x8xf32>
    %cst_54 = arith.constant dense<0.000000e+00> : vector<8x4xf32>
    %93 = tpu.matmul %92, %79, %cst_54 {dimension_numbers = #tpu.dot_dimension_numbers<[1], [0], [0], [1], [0, 0, 1, 1], [], []>} : vector<8x8xf32>, vector<8x4xf32>, vector<8x4xf32> -> vector<8x4xf32>
    %c0_55 = arith.constant 0 : index
    %c16_56 = arith.constant 16 : index
    %94 = vector.load %arg7[%c0_55, %c16_56] : memref<8x32xf32, #tpu.memory_space<vmem>>, vector<8x4xf32>
    tpu.vector_store %arg7[%c0_55, %c16_56], %93 {strides = array<i32>} : memref<8x32xf32, #tpu.memory_space<vmem>>, vector<8x4xf32>,
    %c0_57 = arith.constant 0 : index
    %c20 = arith.constant 20 : index
    %95 = vector.load %arg6[%c0_57, %c20] : memref<8x96xf32, #tpu.memory_space<vmem>>, vector<8x4xf32>
    %c0_58 = arith.constant 0 : index
    %c52 = arith.constant 52 : index
    %96 = vector.load %arg6[%c0_58, %c52] : memref<8x96xf32, #tpu.memory_space<vmem>>, vector<8x4xf32>
    %c0_59 = arith.constant 0 : index
    %c84 = arith.constant 84 : index
    %97 = vector.load %arg6[%c0_59, %c84] : memref<8x96xf32, #tpu.memory_space<vmem>>, vector<8x4xf32>
    %cst_60 = arith.constant dense<0.000000e+00> : vector<8x8xf32>
    %98 = tpu.matmul %95, %96, %cst_60 {dimension_numbers = #tpu.dot_dimension_numbers<[1], [1], [0], [0], [0, 0, 1, 0], [], []>} : vector<8x4xf32>, vector<8x4xf32>, vector<8x8xf32> -> vector<8x8xf32>
    %cst_61 = arith.constant 5.000000e-01 : f32
    %99 = vector.broadcast %cst_61 : f32 to vector<8x8xf32>
    %100 = arith.mulf %98, %99 : vector<8x8xf32>
    %cst_62 = arith.constant dense<0xFF800000> : vector<8xf32>
    %101 = vector.multi_reduction <maximumf>, %100, %cst_62 [1] : vector<8x8xf32> to vector<8xf32>
    %102 = vector.shape_cast %101 : vector<8xf32> to vector<8x1xf32>
    %103 = vector.broadcast %102 : vector<8x1xf32> to vector<8x8xf32>
    %104 = arith.subf %100, %103 : vector<8x8xf32>
    %105 = math.exp %104 : vector<8x8xf32>
    %cst_63 = arith.constant dense<0.000000e+00> : vector<8xf32>
    %106 = vector.multi_reduction <add>, %105, %cst_63 [1] : vector<8x8xf32> to vector<8xf32>
    %107 = vector.shape_cast %106 : vector<8xf32> to vector<8x1xf32>
    %108 = tpu.reciprocal %107 {approx = true} : vector<8x1xf32> -> vector<8x1xf32>
    %109 = vector.broadcast %108 : vector<8x1xf32> to vector<8x8xf32>
    %110 = arith.mulf %105, %109 : vector<8x8xf32>
    %cst_64 = arith.constant dense<0.000000e+00> : vector<8x4xf32>
    %111 = tpu.matmul %110, %97, %cst_64 {dimension_numbers = #tpu.dot_dimension_numbers<[1], [0], [0], [1], [0, 0, 1, 1], [], []>} : vector<8x8xf32>, vector<8x4xf32>, vector<8x4xf32> -> vector<8x4xf32>
    %c0_65 = arith.constant 0 : index
    %c20_66 = arith.constant 20 : index
    %112 = vector.load %arg7[%c0_65, %c20_66] : memref<8x32xf32, #tpu.memory_space<vmem>>, vector<8x4xf32>
    tpu.vector_store %arg7[%c0_65, %c20_66], %111 {strides = array<i32>} : memref<8x32xf32, #tpu.memory_space<vmem>>, vector<8x4xf32>,
    %c0_67 = arith.constant 0 : index
    %c24 = arith.constant 24 : index
    %113 = vector.load %arg6[%c0_67, %c24] : memref<8x96xf32, #tpu.memory_space<vmem>>, vector<8x4xf32>
    %c0_68 = arith.constant 0 : index
    %c56 = arith.constant 56 : index
    %114 = vector.load %arg6[%c0_68, %c56] : memref<8x96xf32, #tpu.memory_space<vmem>>, vector<8x4xf32>
    %c0_69 = arith.constant 0 : index
    %c88 = arith.constant 88 : index
    %115 = vector.load %arg6[%c0_69, %c88] : memref<8x96xf32, #tpu.memory_space<vmem>>, vector<8x4xf32>
    %cst_70 = arith.constant dense<0.000000e+00> : vector<8x8xf32>
    %116 = tpu.matmul %113, %114, %cst_70 {dimension_numbers = #tpu.dot_dimension_numbers<[1], [1], [0], [0], [0, 0, 1, 0], [], []>} : vector<8x4xf32>, vector<8x4xf32>, vector<8x8xf32> -> vector<8x8xf32>
    %cst_71 = arith.constant 5.000000e-01 : f32
    %117 = vector.broadcast %cst_71 : f32 to vector<8x8xf32>
    %118 = arith.mulf %116, %117 : vector<8x8xf32>
    %cst_72 = arith.constant dense<0xFF800000> : vector<8xf32>
    %119 = vector.multi_reduction <maximumf>, %118, %cst_72 [1] : vector<8x8xf32> to vector<8xf32>
    %120 = vector.shape_cast %119 : vector<8xf32> to vector<8x1xf32>
    %121 = vector.broadcast %120 : vector<8x1xf32> to vector<8x8xf32>
    %122 = arith.subf %118, %121 : vector<8x8xf32>
    %123 = math.exp %122 : vector<8x8xf32>
    %cst_73 = arith.constant dense<0.000000e+00> : vector<8xf32>
    %124 = vector.multi_reduction <add>, %123, %cst_73 [1] : vector<8x8xf32> to vector<8xf32>
    %125 = vector.shape_cast %124 : vector<8xf32> to vector<8x1xf32>
    %126 = tpu.reciprocal %125 {approx = true} : vector<8x1xf32> -> vector<8x1xf32>
    %127 = vector.broadcast %126 : vector<8x1xf32> to vector<8x8xf32>
    %128 = arith.mulf %123, %127 : vector<8x8xf32>
    %cst_74 = arith.constant dense<0.000000e+00> : vector<8x4xf32>
    %129 = tpu.matmul %128, %115, %cst_74 {dimension_numbers = #tpu.dot_dimension_numbers<[1], [0], [0], [1], [0, 0, 1, 1], [], []>} : vector<8x8xf32>, vector<8x4xf32>, vector<8x4xf32> -> vector<8x4xf32>
    %c0_75 = arith.constant 0 : index
    %c24_76 = arith.constant 24 : index
    %130 = vector.load %arg7[%c0_75, %c24_76] : memref<8x32xf32, #tpu.memory_space<vmem>>, vector<8x4xf32>
    tpu.vector_store %arg7[%c0_75, %c24_76], %129 {strides = array<i32>} : memref<8x32xf32, #tpu.memory_space<vmem>>, vector<8x4xf32>,
    %c0_77 = arith.constant 0 : index
    %c28 = arith.constant 28 : index
    %131 = vector.load %arg6[%c0_77, %c28] : memref<8x96xf32, #tpu.memory_space<vmem>>, vector<8x4xf32>
    %c0_78 = arith.constant 0 : index
    %c60 = arith.constant 60 : index
    %132 = vector.load %arg6[%c0_78, %c60] : memref<8x96xf32, #tpu.memory_space<vmem>>, vector<8x4xf32>
    %c0_79 = arith.constant 0 : index
    %c92 = arith.constant 92 : index
    %133 = vector.load %arg6[%c0_79, %c92] : memref<8x96xf32, #tpu.memory_space<vmem>>, vector<8x4xf32>
    %cst_80 = arith.constant dense<0.000000e+00> : vector<8x8xf32>
    %134 = tpu.matmul %131, %132, %cst_80 {dimension_numbers = #tpu.dot_dimension_numbers<[1], [1], [0], [0], [0, 0, 1, 0], [], []>} : vector<8x4xf32>, vector<8x4xf32>, vector<8x8xf32> -> vector<8x8xf32>
    %cst_81 = arith.constant 5.000000e-01 : f32
    %135 = vector.broadcast %cst_81 : f32 to vector<8x8xf32>
    %136 = arith.mulf %134, %135 : vector<8x8xf32>
    %cst_82 = arith.constant dense<0xFF800000> : vector<8xf32>
    %137 = vector.multi_reduction <maximumf>, %136, %cst_82 [1] : vector<8x8xf32> to vector<8xf32>
    %138 = vector.shape_cast %137 : vector<8xf32> to vector<8x1xf32>
    %139 = vector.broadcast %138 : vector<8x1xf32> to vector<8x8xf32>
    %140 = arith.subf %136, %139 : vector<8x8xf32>
    %141 = math.exp %140 : vector<8x8xf32>
    %cst_83 = arith.constant dense<0.000000e+00> : vector<8xf32>
    %142 = vector.multi_reduction <add>, %141, %cst_83 [1] : vector<8x8xf32> to vector<8xf32>
    %143 = vector.shape_cast %142 : vector<8xf32> to vector<8x1xf32>
    %144 = tpu.reciprocal %143 {approx = true} : vector<8x1xf32> -> vector<8x1xf32>
    %145 = vector.broadcast %144 : vector<8x1xf32> to vector<8x8xf32>
    %146 = arith.mulf %141, %145 : vector<8x8xf32>
    %cst_84 = arith.constant dense<0.000000e+00> : vector<8x4xf32>
    %147 = tpu.matmul %146, %133, %cst_84 {dimension_numbers = #tpu.dot_dimension_numbers<[1], [0], [0], [1], [0, 0, 1, 1], [], []>} : vector<8x8xf32>, vector<8x4xf32>, vector<8x4xf32> -> vector<8x4xf32>
    %c0_85 = arith.constant 0 : index
    %c28_86 = arith.constant 28 : index
    %148 = vector.load %arg7[%c0_85, %c28_86] : memref<8x32xf32, #tpu.memory_space<vmem>>, vector<8x4xf32>
    tpu.vector_store %arg7[%c0_85, %c28_86], %147 {strides = array<i32>} : memref<8x32xf32, #tpu.memory_space<vmem>>, vector<8x4xf32>,
    %c0_87 = arith.constant 0 : index
    %c0_88 = arith.constant 0 : index
    %149 = vector.load %arg7[%c0_87, %c0_88] : memref<8x32xf32, #tpu.memory_space<vmem>>, vector<8x32xf32>
    %c0_89 = arith.constant 0 : index
    %c0_90 = arith.constant 0 : index
    %150 = vector.load %arg3[%c0_89, %c0_90] : memref<32x32xf32, #tpu.memory_space<vmem>>, vector<32x32xf32>
    %cst_91 = arith.constant dense<0.000000e+00> : vector<8x32xf32>
    %151 = tpu.matmul %149, %150, %cst_91 {dimension_numbers = #tpu.dot_dimension_numbers<[1], [0], [0], [1], [0, 0, 1, 1], [], []>} : vector<8x32xf32>, vector<32x32xf32>, vector<8x32xf32> -> vector<8x32xf32>
    %c0_92 = arith.constant 0 : index
    %c0_93 = arith.constant 0 : index
    %152 = vector.load %arg4[%c0_92, %c0_93] : memref<1x32xf32, #tpu.memory_space<vmem>>, vector<1x32xf32>
    %153 = vector.broadcast %152 : vector<1x32xf32> to vector<8x32xf32>
    %154 = arith.addf %151, %153 : vector<8x32xf32>
    %c0_94 = arith.constant 0 : index
    %c0_95 = arith.constant 0 : index
    %c0_96 = arith.constant 0 : index
    %155 = vector.load %arg5[%c0_94, %c0_95, %c0_96] : memref<1x8x32xf32, #tpu.memory_space<vmem>>, vector<1x8x32xf32>
    %156 = vector.shape_cast %155 : vector<1x8x32xf32> to vector<8x32xf32>
    %157 = vector.shape_cast %154 : vector<8x32xf32> to vector<1x8x32xf32>
    tpu.vector_store %arg5[%c0_94, %c0_95, %c0_96], %157 {strides = array<i32>} : memref<1x8x32xf32, #tpu.memory_space<vmem>>, vector<1x8x32xf32>,
    return
  }
  func.func @transform_0(%arg0: i32) -> (i32, i32, i32) {
    %c0_i32 = arith.constant 0 : i32
    %c0_i32_0 = arith.constant 0 : i32
    %c0_i32_1 = arith.constant 0 : i32
    return %arg0, %c0_i32, %c0_i32_0 : i32, i32, i32
  }
  func.func @transform_1(%arg0: i32) -> (i32, i32) {
    %c0_i32 = arith.constant 0 : i32
    %c0_i32_0 = arith.constant 0 : i32
    %c0_i32_1 = arith.constant 0 : i32
    return %c0_i32, %c0_i32_0 : i32, i32
  }
  func.func @transform_2(%arg0: i32) -> (i32, i32) {
    %c0_i32 = arith.constant 0 : i32
    %c0_i32_0 = arith.constant 0 : i32
    %c0_i32_1 = arith.constant 0 : i32
    return %c0_i32, %c0_i32_0 : i32, i32
  }
  func.func @transform_3(%arg0: i32) -> (i32, i32) {
    %c0_i32 = arith.constant 0 : i32
    %c0_i32_0 = arith.constant 0 : i32
    %c0_i32_1 = arith.constant 0 : i32
    return %c0_i32, %c0_i32_0 : i32, i32
  }
  func.func @transform_4(%arg0: i32) -> (i32, i32, i32) {
    %c0_i32 = arith.constant 0 : i32
    %c0_i32_0 = arith.constant 0 : i32
    %c0_i32_1 = arith.constant 0 : i32
    return %arg0, %c0_i32, %c0_i32_0 : i32, i32, i32
  }
}

</mosaic_0001>

<llo_original>
// kernel: tpu_custom_call.1
$region0: #{tpu_custom_call.1}
  #allocation0 [shape = 'u32[]', space=smem, size = 0x4, offset = 0x4, fixed_abs, tag = 'smem constant byte address 0x4 - core index']
  #allocation1 [shape = 'u32[144,128]{1,0:T(1,128)}', space=vmem, size = 0x12000, scoped, tag = 'internal scratch']
  #allocation2 [shape = 'f32[8,96]{1,0:T(8,128)}', space=vmem, size = 0x1000, scoped, tag = 'scratch operand']
  #allocation3 [shape = 'f32[8,32]{1,0:T(8,128)}', space=vmem, size = 0x1000, scoped, tag = 'scratch operand']
  %s0 = inlined_call_operand.hbm [shape: f32[2,8,32], index: 0, kind: input, shape index: {}]
  %s1 = inlined_call_operand.hbm [shape: f32[32,96], index: 1, kind: input, shape index: {}]
  %s2 = inlined_call_operand.hbm [shape: f32[32,32], index: 2, kind: input, shape index: {}]
  %s3 = inlined_call_operand.vmem [shape: f32[1,32], index: 3, kind: input, shape index: {}]
  %s4 = inlined_call_operand.hbm [shape: f32[2,8,32], index: 4, kind: output, shape index: {}]
  %s5 = sld [smem:[#allocation0]]
  $region61: #{tpu_custom_call.1} parent=0
    _
  %s7 = ssub.s32 1, %s5
  %s8 = scalar_select 0, %s7, %s5
  $region1: #{tpu_custom_call.1} parent=0
    #allocation4 [shape = 'u8[8192]{0}', space=vmem, size = 0x2000, scoped, tag = 'input window, operand 0']
    #allocation5 [shape = 's32[2]{0}', space=sflag, size = 0x8, scoped, tag = 'scoped memory for tpu_custom_call.1']
    #allocation6 [shape = 's32[2]{0}', space=sflag, size = 0x8, scoped, tag = 'scoped memory for tpu_custom_call.1']
    #allocation7 [shape = 'u8[16384]{0}', space=vmem, size = 0x4000, scoped, tag = 'input window, operand 1, single buffered']
    #allocation8 [shape = 's32[1]{0}', space=sflag, size = 0x4, scoped, tag = 'scoped memory for tpu_custom_call.1']
    #allocation9 [shape = 'u8[16384]{0}', space=vmem, size = 0x4000, scoped, tag = 'input window, operand 2, single buffered']
    #allocation10 [shape = 'u8[8192]{0}', space=vmem, size = 0x2000, scoped, tag = 'output window, operand 0']
    %9 = vsyncpa [#allocation5], 0
    %s10 = scalar_lea.sflag [#allocation5], 1
    %11 = vsyncpa %s10, 0
    %12 = vsyncpa [#allocation8], 0
    %13 = vsyncpa [#allocation6], 0
    %s14 = scalar_lea.sflag [#allocation6], 1
    %15 = vsyncpa %s14, 0
    loop: start=0, step=1, limit=4
    $region2: #{tpu_custom_call.1} parent=1 // loop_pre_header
      _
    $region3: #{tpu_custom_call.1} parent=1 // loop_header
      %s17 = sphi 0, %s21
      %p18 = scmp.ge.s32.totalorder %s17, 4
      %s27 = sphi 0, %s29
      %s30 = sphi 0, %s27
      %s31 = sphi 0, %s30
      %s47 = sphi 0, %s31
      %s51 = sphi 0, %s51
      %s53 = sphi 0, %s51
      %s54 = sphi 0, %s53
      %s68 = sphi 0, %s54
      %s72 = sphi 0, %s72
      %s74 = sphi 0, %s72
      %s75 = sphi 0, %s74
      %s89 = sphi 0, %s75
      %s93 = sphi 0, %s93
      %s95 = sphi 0, %s93
      %s96 = sphi 0, %s95
      %s110 = sphi 0, %s96
      %s116 = sphi 0, %s118
      %s119 = sphi 0, %s116
      %s120 = sphi 0, %s119
      %s136 = sphi 0, %s120
    $region4: #{tpu_custom_call.1} parent=1 // loop_header_branch
      %20 = sbr.rel (%p18) target = $region8
    $region5: #{tpu_custom_call.1} parent=1 // loop_body
      %s22 = ssub.s32 %s17, 1
      %s23 = ssub.s32 %s17, 2
      %s24 = sadd.s32 %s17, 1
      %s25 = ssub.s32 %s17, %s24
      %p26 = scmp.eq.s32.totalorder %s25, 0
      %s28 = sadd.s32 %s27, 1
      %s29 = scalar_select %p26, %s27, %s28
      %p32 = pneg %p26
      %p33 = scmp.eq.s32.totalorder %s17, 1
      %p34 = por %p32, %p33
      %p35 = scmp.ne.s32.totalorder %s27, %s30
      %p36 = scmp.eq.s32.totalorder %s17, 0
      %p37 = por %p35, %p36
      %p38 = scmp.ne.s32.totalorder %s27, %s30
      %p39 = scmp.eq.s32.totalorder %s22, 1
      %p40 = por %p38, %p39
      %p41 = scmp.ne.s32.totalorder %s30, %s31
      %p42 = scmp.eq.s32.totalorder %s22, 0
      %p43 = por %p41, %p42
      %p44 = scmp.ne.s32.totalorder %s30, %s31
      %p45 = scmp.eq.s32.totalorder %s23, 1
      %p46 = por %p44, %p45
      %p48 = scmp.ne.s32.totalorder %s31, %s47
      %p49 = scmp.eq.s32.totalorder %s23, 0
      %p50 = por %p48, %p49
      %s52 = sadd.s32 %s51, 1
      %p55 = scmp.eq.s32.totalorder %s17, 1
      %p56 = scmp.ne.s32.totalorder %s51, %s53
      %p57 = scmp.eq.s32.totalorder %s17, 0
      %p58 = por %p56, %p57
      %p59 = scmp.ne.s32.totalorder %s51, %s53
      %p60 = scmp.eq.s32.totalorder %s22, 1
      %p61 = por %p59, %p60
      %p62 = scmp.ne.s32.totalorder %s53, %s54
      %p63 = scmp.eq.s32.totalorder %s22, 0
      %p64 = por %p62, %p63
      %p65 = scmp.ne.s32.totalorder %s53, %s54
      %p66 = scmp.eq.s32.totalorder %s23, 1
      %p67 = por %p65, %p66
      %p69 = scmp.ne.s32.totalorder %s54, %s68
      %p70 = scmp.eq.s32.totalorder %s23, 0
      %p71 = por %p69, %p70
      %s73 = sadd.s32 %s72, 1
      %p76 = scmp.eq.s32.totalorder %s17, 1
      %p77 = scmp.ne.s32.totalorder %s72, %s74
      %p78 = scmp.eq.s32.totalorder %s17, 0
      %p79 = por %p77, %p78
      %p80 = scmp.ne.s32.totalorder %s72, %s74
      %p81 = scmp.eq.s32.totalorder %s22, 1
      %p82 = por %p80, %p81
      %p83 = scmp.ne.s32.totalorder %s74, %s75
      %p84 = scmp.eq.s32.totalorder %s22, 0
      %p85 = por %p83, %p84
      %p86 = scmp.ne.s32.totalorder %s74, %s75
      %p87 = scmp.eq.s32.totalorder %s23, 1
      %p88 = por %p86, %p87
      %p90 = scmp.ne.s32.totalorder %s75, %s89
      %p91 = scmp.eq.s32.totalorder %s23, 0
      %p92 = por %p90, %p91
      %s94 = sadd.s32 %s93, 1
      %p97 = scmp.eq.s32.totalorder %s17, 1
      %p98 = scmp.ne.s32.totalorder %s93, %s95
      %p99 = scmp.eq.s32.totalorder %s17, 0
      %p100 = por %p98, %p99
      %p101 = scmp.ne.s32.totalorder %s93, %s95
      %p102 = scmp.eq.s32.totalorder %s22, 1
      %p103 = por %p101, %p102
      %p104 = scmp.ne.s32.totalorder %s95, %s96
      %p105 = scmp.eq.s32.totalorder %s22, 0
      %p106 = por %p104, %p105
      %p107 = scmp.ne.s32.totalorder %s95, %s96
      %p108 = scmp.eq.s32.totalorder %s23, 1
      %p109 = por %p107, %p108
      %p111 = scmp.ne.s32.totalorder %s96, %s110
      %p112 = scmp.eq.s32.totalorder %s23, 0
      %p113 = por %p111, %p112
      %s114 = ssub.s32 %s17, %s24
      %p115 = scmp.eq.s32.totalorder %s114, 0
      %s117 = sadd.s32 %s116, 1
      %s118 = scalar_select %p115, %s116, %s117
      %p121 = pneg %p115
      %p122 = scmp.eq.s32.totalorder %s17, 1
      %p123 = por %p121, %p122
      %p124 = scmp.ne.s32.totalorder %s116, %s119
      %p125 = scmp.eq.s32.totalorder %s17, 0
      %p126 = por %p124, %p125
      %p127 = scmp.ne.s32.totalorder %s116, %s119
      %p128 = scmp.eq.s32.totalorder %s22, 1
      %p129 = por %p127, %p128
      %p130 = scmp.ne.s32.totalorder %s119, %s120
      %p131 = scmp.eq.s32.totalorder %s22, 0
      %p132 = por %p130, %p131
      %p133 = scmp.ne.s32.totalorder %s119, %s120
      %p134 = scmp.eq.s32.totalorder %s23, 1
      %p135 = por %p133, %p134
      %p137 = scmp.ne.s32.totalorder %s120, %s136
      %p138 = scmp.eq.s32.totalorder %s23, 0
      %p139 = por %p137, %p138
      %p140 = scmp.le.s32.totalorder 1, %s17
      %p141 = scmp.lt.s32.totalorder %s17, 3
      %p142 = pnand %p140, %p141
      %p143 = pneg %p142
      // Predicated region
      $region9: #{tpu_custom_call.1} parent=5 // pred_check
        _
      $region10: #{tpu_custom_call.1} parent=5 // pred_check_branch
        %145 = sbr.rel (%p142) target = $region12
      $region11: #{tpu_custom_call.1} parent=5 // pred_region
        %s146 = ssub.s32 %s17, 1
        // Predicated region
        $region13: #{tpu_custom_call.1} parent=11 // pred_check
          %p147 = pneg %p64
        $region14: #{tpu_custom_call.1} parent=11 // pred_check_branch
          %149 = sbr.rel (%p147) target = $region16
        $region15: #{tpu_custom_call.1} parent=11 // pred_region
          %s151 = ssub.s32 512, 512
          %152 = vsyncadd [#allocation8], %s151
          %s153 = sshll.u32 [#allocation7], 4
          %s154 = int_to_ptr.vmem [resolvable:$true] %s153
          %159 = dma.hbm_to_vmem [thread:$0]  %s1, 512, %s154, [#allocation8], 128, 128, 8
        $region16: #{tpu_custom_call.1} parent=11 // pred_fallthru
          _
        // Predicated region
        $region17: #{tpu_custom_call.1} parent=11 // pred_check
          %p160 = pneg %p85
        $region18: #{tpu_custom_call.1} parent=11 // pred_check_branch
          %162 = sbr.rel (%p160) target = $region20
        $region19: #{tpu_custom_call.1} parent=11 // pred_region
          %s164 = ssub.s32 512, 512
          %165 = vsyncadd [#allocation8], %s164
          %s166 = sshll.u32 [#allocation9], 4
          %s167 = int_to_ptr.vmem [resolvable:$true] %s166
          %172 = dma.hbm_to_vmem [thread:$0]  %s2, 512, %s167, [#allocation8], 128, 128, 8
        $region20: #{tpu_custom_call.1} parent=11 // pred_fallthru
          _
        // Predicated region
        $region21: #{tpu_custom_call.1} parent=11 // pred_check
          %p173 = pneg %p106
        $region22: #{tpu_custom_call.1} parent=11 // pred_check_branch
          %175 = sbr.rel (%p173) target = $region24
        $region23: #{tpu_custom_call.1} parent=11 // pred_region
          _
        $region24: #{tpu_custom_call.1} parent=11 // pred_fallthru
          _
      $region12: #{tpu_custom_call.1} parent=5 // pred_fallthru
        _
      %p176 = scmp.lt.s32.totalorder %s17, 2
      // Predicated region
      $region25: #{tpu_custom_call.1} parent=5 // pred_check
        %p177 = pneg %p176
      $region26: #{tpu_custom_call.1} parent=5 // pred_check_branch
        %179 = sbr.rel (%p177) target = $region28
      $region27: #{tpu_custom_call.1} parent=5 // pred_region
        // Predicated region
        $region29: #{tpu_custom_call.1} parent=27 // pred_check
          %p180 = pneg %p37
        $region30: #{tpu_custom_call.1} parent=27 // pred_check_branch
          %182 = sbr.rel (%p180) target = $region32
        $region31: #{tpu_custom_call.1} parent=27 // pred_region
          %s183 = sand.u32 %s27, 1
          %s184 = scalar_lea.sflag [#allocation5], %s183
          %s185 = sand.u32 %s27, 1
          %s186 = smul.addr %s185, 8
          %s187 = scalar_lea.vmem [#allocation4], %s186
          %s189 = ssub.s32 128, 128
          %190 = vsyncadd %s184, %s189
          %s191 = smul.addr %s17, 128
          %s192 = scalar_lea.hbm %s0, %s191
          %s194 = sshll.u32 %s187, 4
          %s195 = int_to_ptr.vmem [resolvable:$true] %s194
          %197 = dma.hbm_to_vmem [thread:$0]  %s192, 128, %s195, %s184
        $region32: #{tpu_custom_call.1} parent=27 // pred_fallthru
          _
      $region28: #{tpu_custom_call.1} parent=5 // pred_fallthru
        _
      %p198 = scmp.le.s32.totalorder 1, %s17
      %p199 = scmp.lt.s32.totalorder %s17, 3
      %p200 = pnand %p198, %p199
      %p201 = pneg %p200
      // Predicated region
      $region33: #{tpu_custom_call.1} parent=5 // pred_check
        _
      $region34: #{tpu_custom_call.1} parent=5 // pred_check_branch
        %203 = sbr.rel (%p200) target = $region36
      $region35: #{tpu_custom_call.1} parent=5 // pred_region
        %s204 = ssub.s32 %s17, 1
        %s205 = sand.u32 %s30, 1
        %s206 = scalar_lea.sflag [#allocation5], %s205
        %s207 = sand.u32 %s30, 1
        %s208 = smul.addr %s207, 8
        %s209 = scalar_lea.vmem [#allocation4], %s208
        // Predicated region
        $region37: #{tpu_custom_call.1} parent=35 // pred_check
          %p210 = pneg %p43
        $region38: #{tpu_custom_call.1} parent=35 // pred_check_branch
          %212 = sbr.rel (%p210) target = $region40
        $region39: #{tpu_custom_call.1} parent=35 // pred_region
          %213 = dma.done %s206, 128
        $region40: #{tpu_custom_call.1} parent=35 // pred_fallthru
          _
        // Predicated region
        $region41: #{tpu_custom_call.1} parent=35 // pred_check
          %p214 = pneg %p64
        $region42: #{tpu_custom_call.1} parent=35 // pred_check_branch
          %216 = sbr.rel (%p214) target = $region44
        $region43: #{tpu_custom_call.1} parent=35 // pred_region
          %217 = dma.done [#allocation8], 512
        $region44: #{tpu_custom_call.1} parent=35 // pred_fallthru
          _
        // Predicated region
        $region45: #{tpu_custom_call.1} parent=35 // pred_check
          %p218 = pneg %p85
        $region46: #{tpu_custom_call.1} parent=35 // pred_check_branch
          %220 = sbr.rel (%p218) target = $region48
        $region47: #{tpu_custom_call.1} parent=35 // pred_region
          %221 = dma.done [#allocation8], 512
        $region48: #{tpu_custom_call.1} parent=35 // pred_fallthru
          _
        %s222 = sand.u32 %s30, 1
        %s223 = scalar_lea.sflag [#allocation5], %s222
        %s224 = sand.u32 %s30, 1
        %s225 = smul.addr %s224, 8
        %s226 = scalar_lea.vmem [#allocation4], %s225
        %p227 = pneg %p43
        %p228 = pneg %p40
        %p229 = pneg %p64
        %p230 = pneg %p61
        %p231 = pneg %p85
        %p232 = pneg %p82
        %p233 = pneg %p106
        %p234 = pneg %p103
        %p235 = pneg %p132
        %p236 = pneg %p129
        %s237 = sand.u32 %s119, 1
        %s238 = scalar_lea.sflag [#allocation6], %s237
        %s239 = sand.u32 %s119, 1
        %s240 = smul.addr %s239, 8
        %s241 = scalar_lea.vmem [#allocation10], %s240
        %v242 = vld [vmem:[%s209] sm:$0xff]
        %v243 = vld [vmem:[#allocation7] sm:$0xff]
        %v244 = vld [vmem:[#allocation7 + $0x8] sm:$0xff]
        %v245 = vld [vmem:[#allocation7 + $0x10] sm:$0xff]
        %v246 = vld [vmem:[#allocation7 + $0x18] sm:$0xff]
        %vm247 = vcmask 261120
        %v249 = vsel %vm247, %v242, 0
        %251 = vmatprep.subr.mxu0 0.0
        %252 = vmatpush1.msra.mxu0 0.0
        %253 = vmatprep.subr.mxu0 0.0
        %254 = vmatpush1.msra.mxu0 0.0
        %255 = vmatprep.subr.mxu0 0.0
        %256 = vmatpush1.msra.mxu0 0.0
        %257 = vmatprep.subr.mxu0 0.0
        %258 = vmatpush1.msra.mxu0 0.0
        %259 = vmatprep.subr.mxu0 0.0
        %260 = vmatpush1.msra.mxu0 0.0
        %261 = vmatprep.subr.mxu0 0.0
        %262 = vmatpush1.msra.mxu0 0.0
        %263 = vmatprep.subr.mxu0 0.0
        %264 = vmatpush1.msra.mxu0 0.0
        %265 = vmatprep.subr.mxu0 0.0
        %266 = vmatpush1.msra.mxu0 0.0
        %267 = vmatprep.subr.mxu0 0.0
        %268 = vmatpush1.msra.mxu0 0.0
        %269 = vmatprep.subr.mxu0 0.0
        %270 = vmatpush1.msra.mxu0 0.0
        %271 = vmatprep.subr.mxu0 0.0
        %272 = vmatpush1.msra.mxu0 0.0
        %273 = vmatprep.subr.mxu0 0.0
        %274 = vmatpush1.msra.mxu0 0.0
        %275 = vmatprep.subr.mxu0 0.0
        %276 = vmatpush1.msra.mxu0 %v246
        %277 = vmatprep.subr.mxu0 0.0
        %278 = vmatpush1.msra.mxu0 %v245
        %279 = vmatprep.subr.mxu0 0.0
        %280 = vmatpush1.msra.mxu0 %v244
        %281 = vmatprep.subr.mxu0 0.0
        %282 = vmatpush1.msra.mxu0 %v243
        %283 = vmatprep.subr.mxu0 0.0
        %284 = vmatpush2.msra.mxu0 0.0
        %285 = vmatprep.subr.mxu0 0.0
        %286 = vmatpush2.msra.mxu0 0.0
        %287 = vmatprep.subr.mxu0 0.0
        %288 = vmatpush2.msra.mxu0 0.0
        %289 = vmatprep.subr.mxu0 0.0
        %290 = vmatpush2.msra.mxu0 0.0
        %291 = vmatprep.subr.mxu0 0.0
        %292 = vmatpush2.msra.mxu0 0.0
        %293 = vmatprep.subr.mxu0 0.0
        %294 = vmatpush2.msra.mxu0 0.0
        %295 = vmatprep.subr.mxu0 0.0
        %296 = vmatpush2.msra.mxu0 0.0
        %297 = vmatprep.subr.mxu0 0.0
        %298 = vmatpush2.msra.mxu0 0.0
        %299 = vmatprep.subr.mxu0 0.0
        %300 = vmatpush2.msra.mxu0 0.0
        %301 = vmatprep.subr.mxu0 0.0
        %302 = vmatpush2.msra.mxu0 0.0
        %303 = vmatprep.subr.mxu0 0.0
        %304 = vmatpush2.msra.mxu0 0.0
        %305 = vmatprep.subr.mxu0 0.0
        %306 = vmatpush2.msra.mxu0 0.0
        %307 = vmatprep.subr.mxu0 0.0
        %308 = vmatpush2.msra.mxu0 0.0
        %309 = vmatprep.subr.mxu0 0.0
        %310 = vmatpush2.msra.mxu0 0.0
        %311 = vmatprep.subr.mxu0 0.0
        %312 = vmatpush2.msra.mxu0 0.0
        %313 = vmatprep.subr.mxu0 0.0
        %314 = vmatpush2.msra.mxu0 0.0
        %315 = vmatprep.mubr.f32.mxu0 0.0
        %316 = vmatmul.mubr.f32.gmra.mxu0 %v249
        %v317 = vpop.f32.mrf.mxu0
        %v318 = vadd.f32 0.0, %v317
        %v319 = vpop.f32.mrf.mxu0
        %320 = vdwg.mxu0
        %vm321 = vcmask 785408
        %322 = vst.msk [vmem:[#allocation2] sm:$0xff] %vm321, %v318
        %v323 = vld [vmem:[#allocation2] sm:$0xff]
        %325 = vrot.lane.b32.xlu0 %v323, 96
        %v326 = vpop.permute.xlu0 %325
        %vm327 = vcmask 31744
        %v328 = vsel %vm327, %v323, 0
        %v330 = vsel %vm327, %v326, 0
        %332 = vmatprep.subr.mxu0 0.0
        %333 = vmatpush1.xpose.msra.mxu0 0.0
        %334 = vmatprep.subr.mxu0 0.0
        %335 = vmatpush1.xpose.msra.mxu0 0.0
        %336 = vmatprep.subr.mxu0 0.0
        %337 = vmatpush1.xpose.msra.mxu0 0.0
        %338 = vmatprep.subr.mxu0 0.0
        %339 = vmatpush1.xpose.msra.mxu0 0.0
        %340 = vmatprep.subr.mxu0 0.0
        %341 = vmatpush1.xpose.msra.mxu0 0.0
        %342 = vmatprep.subr.mxu0 0.0
        %343 = vmatpush1.xpose.msra.mxu0 0.0
        %344 = vmatprep.subr.mxu0 0.0
        %345 = vmatpush1.xpose.msra.mxu0 0.0
        %346 = vmatprep.subr.mxu0 0.0
        %347 = vmatpush1.xpose.msra.mxu0 0.0
        %348 = vmatprep.subr.mxu0 0.0
        %349 = vmatpush1.xpose.msra.mxu0 0.0
        %350 = vmatprep.subr.mxu0 0.0
        %351 = vmatpush1.xpose.msra.mxu0 0.0
        %352 = vmatprep.subr.mxu0 0.0
        %353 = vmatpush1.xpose.msra.mxu0 0.0
        %354 = vmatprep.subr.mxu0 0.0
        %355 = vmatpush1.xpose.msra.mxu0 0.0
        %356 = vmatprep.subr.mxu0 0.0
        %357 = vmatpush1.xpose.msra.mxu0 0.0
        %358 = vmatprep.subr.mxu0 0.0
        %359 = vmatpush1.xpose.msra.mxu0 0.0
        %360 = vmatprep.subr.mxu0 0.0
        %361 = vmatpush1.xpose.msra.mxu0 0.0
        %362 = vmatprep.subr.mxu0 0.0
        %363 = vmatpush1.xpose.msra.mxu0 %v330
        %364 = vmatprep.subr.mxu0 0.0
        %365 = vmatpush2.xpose.msra.mxu0 0.0
        %366 = vmatprep.subr.mxu0 0.0
        %367 = vmatpush2.xpose.msra.mxu0 0.0
        %368 = vmatprep.subr.mxu0 0.0
        %369 = vmatpush2.xpose.msra.mxu0 0.0
        %370 = vmatprep.subr.mxu0 0.0
        %371 = vmatpush2.xpose.msra.mxu0 0.0
        %372 = vmatprep.subr.mxu0 0.0
        %373 = vmatpush2.xpose.msra.mxu0 0.0
        %374 = vmatprep.subr.mxu0 0.0
        %375 = vmatpush2.xpose.msra.mxu0 0.0
        %376 = vmatprep.subr.mxu0 0.0
        %377 = vmatpush2.xpose.msra.mxu0 0.0
        %378 = vmatprep.subr.mxu0 0.0
        %379 = vmatpush2.xpose.msra.mxu0 0.0
        %380 = vmatprep.subr.mxu0 0.0
        %381 = vmatpush2.xpose.msra.mxu0 0.0
        %382 = vmatprep.subr.mxu0 0.0
        %383 = vmatpush2.xpose.msra.mxu0 0.0
        %384 = vmatprep.subr.mxu0 0.0
        %385 = vmatpush2.xpose.msra.mxu0 0.0
        %386 = vmatprep.subr.mxu0 0.0
        %387 = vmatpush2.xpose.msra.mxu0 0.0
        %388 = vmatprep.subr.mxu0 0.0
        %389 = vmatpush2.xpose.msra.mxu0 0.0
        %390 = vmatprep.subr.mxu0 0.0
        %391 = vmatpush2.xpose.msra.mxu0 0.0
        %392 = vmatprep.subr.mxu0 0.0
        %393 = vmatpush2.xpose.msra.mxu0 0.0
        %394 = vmatprep.subr.mxu0 0.0
        %395 = vmatpush2.xpose.msra.mxu0 0.0
        %396 = vmatprep.mubr.f32.mxu0 0.0
        %397 = vmatmul.mubr.f32.gmra.mxu0 %v328
        %v398 = vpop.f32.mrf.mxu0
        %v399 = vadd.f32 0.0, %v398
        %v400 = vpop.f32.mrf.mxu0
        %401 = vdwg.mxu0
        %v402 = vmul.f32 %v399, 0.5
        %vm403 = vcmask 64512
        %v404 = vsel %vm403, %v402, -inf
        %405 = vmax.xlane.f32.xlu0 %v404
        %v406 = vpop.xlane.xlu0 %405
        %v407 = vsub.f32 %v402, %v406
        %v408 = vmul.f32 %v407, 1.442695
        %v409 = vpow.pop %v408
        %v410 = vsel %vm403, %v409, 0.0
        %411 = vadd.xlane.f32.xlu0 %v410
        %v412 = vpop.xlane.xlu0 %411
        %v413 = vrcp.pop %v412
        %v414 = vmul.f32 %v409, %v413
        %415 = vrot.lane.b32.xlu0 %v323, 64
        %v416 = vpop.permute.xlu0 %415
        %v419 = vsel %vm403, %v414, 0
        %421 = vmatprep.subr.mxu0 0.0
        %422 = vmatpush1.msra.mxu0 0.0
        %423 = vmatprep.subr.mxu0 0.0
        %424 = vmatpush1.msra.mxu0 0.0
        %425 = vmatprep.subr.mxu0 0.0
        %426 = vmatpush1.msra.mxu0 0.0
        %427 = vmatprep.subr.mxu0 0.0
        %428 = vmatpush1.msra.mxu0 0.0
        %429 = vmatprep.subr.mxu0 0.0
        %430 = vmatpush1.msra.mxu0 0.0
        %431 = vmatprep.subr.mxu0 0.0
        %432 = vmatpush1.msra.mxu0 0.0
        %433 = vmatprep.subr.mxu0 0.0
        %434 = vmatpush1.msra.mxu0 0.0
        %435 = vmatprep.subr.mxu0 0.0
        %436 = vmatpush1.msra.mxu0 0.0
        %437 = vmatprep.subr.mxu0 0.0
        %438 = vmatpush1.msra.mxu0 0.0
        %439 = vmatprep.subr.mxu0 0.0
        %440 = vmatpush1.msra.mxu0 0.0
        %441 = vmatprep.subr.mxu0 0.0
        %442 = vmatpush1.msra.mxu0 0.0
        %443 = vmatprep.subr.mxu0 0.0
        %444 = vmatpush1.msra.mxu0 0.0
        %445 = vmatprep.subr.mxu0 0.0
        %446 = vmatpush1.msra.mxu0 0.0
        %447 = vmatprep.subr.mxu0 0.0
        %448 = vmatpush1.msra.mxu0 0.0
        %449 = vmatprep.subr.mxu0 0.0
        %450 = vmatpush1.msra.mxu0 0.0
        %451 = vmatprep.subr.mxu0 0.0
        %452 = vmatpush1.msra.mxu0 %v416
        %453 = vmatprep.subr.mxu0 0.0
        %454 = vmatpush2.msra.mxu0 0.0
        %455 = vmatprep.subr.mxu0 0.0
        %456 = vmatpush2.msra.mxu0 0.0
        %457 = vmatprep.subr.mxu0 0.0
        %458 = vmatpush2.msra.mxu0 0.0
        %459 = vmatprep.subr.mxu0 0.0
        %460 = vmatpush2.msra.mxu0 0.0
        %461 = vmatprep.subr.mxu0 0.0
        %462 = vmatpush2.msra.mxu0 0.0
        %463 = vmatprep.subr.mxu0 0.0
        %464 = vmatpush2.msra.mxu0 0.0
        %465 = vmatprep.subr.mxu0 0.0
        %466 = vmatpush2.msra.mxu0 0.0
        %467 = vmatprep.subr.mxu0 0.0
        %468 = vmatpush2.msra.mxu0 0.0
        %469 = vmatprep.subr.mxu0 0.0
        %470 = vmatpush2.msra.mxu0 0.0
        %471 = vmatprep.subr.mxu0 0.0
        %472 = vmatpush2.msra.mxu0 0.0
        %473 = vmatprep.subr.mxu0 0.0
        %474 = vmatpush2.msra.mxu0 0.0
        %475 = vmatprep.subr.mxu0 0.0
        %476 = vmatpush2.msra.mxu0 0.0
        %477 = vmatprep.subr.mxu0 0.0
        %478 = vmatpush2.msra.mxu0 0.0
        %479 = vmatprep.subr.mxu0 0.0
        %480 = vmatpush2.msra.mxu0 0.0
        %481 = vmatprep.subr.mxu0 0.0
        %482 = vmatpush2.msra.mxu0 0.0
        %483 = vmatprep.subr.mxu0 0.0
        %484 = vmatpush2.msra.mxu0 0.0
        %485 = vmatprep.mubr.f32.mxu0 0.0
        %486 = vmatmul.mubr.f32.gmra.mxu0 %v419
        %v487 = vpop.f32.mrf.mxu0
        %v488 = vadd.f32 0.0, %v487
        %v489 = vpop.f32.mrf.mxu0
        %490 = vdwg.mxu0
        %491 = vst.msk [vmem:[#allocation3] sm:$0xff] %vm327, %v488
        %v492 = vld [vmem:[#allocation2] sm:$0xff]
        %494 = vrot.lane.b32.xlu0 %v492, 124
        %v495 = vpop.permute.xlu0 %494
        %496 = vrot.lane.b32.xlu0 %v492, 92
        %v497 = vpop.permute.xlu0 %496
        %v498 = vsel %vm327, %v495, 0
        %v500 = vsel %vm327, %v497, 0
        %502 = vmatprep.subr.mxu0 0.0
        %503 = vmatpush1.xpose.msra.mxu0 0.0
        %504 = vmatprep.subr.mxu0 0.0
        %505 = vmatpush1.xpose.msra.mxu0 0.0
        %506 = vmatprep.subr.mxu0 0.0
        %507 = vmatpush1.xpose.msra.mxu0 0.0
        %508 = vmatprep.subr.mxu0 0.0
        %509 = vmatpush1.xpose.msra.mxu0 0.0
        %510 = vmatprep.subr.mxu0 0.0
        %511 = vmatpush1.xpose.msra.mxu0 0.0
        %512 = vmatprep.subr.mxu0 0.0
        %513 = vmatpush1.xpose.msra.mxu0 0.0
        %514 = vmatprep.subr.mxu0 0.0
        %515 = vmatpush1.xpose.msra.mxu0 0.0
        %516 = vmatprep.subr.mxu0 0.0
        %517 = vmatpush1.xpose.msra.mxu0 0.0
        %518 = vmatprep.subr.mxu0 0.0
        %519 = vmatpush1.xpose.msra.mxu0 0.0
        %520 = vmatprep.subr.mxu0 0.0
        %521 = vmatpush1.xpose.msra.mxu0 0.0
        %522 = vmatprep.subr.mxu0 0.0
        %523 = vmatpush1.xpose.msra.mxu0 0.0
        %524 = vmatprep.subr.mxu0 0.0
        %525 = vmatpush1.xpose.msra.mxu0 0.0
        %526 = vmatprep.subr.mxu0 0.0
        %527 = vmatpush1.xpose.msra.mxu0 0.0
        %528 = vmatprep.subr.mxu0 0.0
        %529 = vmatpush1.xpose.msra.mxu0 0.0
        %530 = vmatprep.subr.mxu0 0.0
        %531 = vmatpush1.xpose.msra.mxu0 0.0
        %532 = vmatprep.subr.mxu0 0.0
        %533 = vmatpush1.xpose.msra.mxu0 %v500
        %534 = vmatprep.subr.mxu0 0.0
        %535 = vmatpush2.xpose.msra.mxu0 0.0
        %536 = vmatprep.subr.mxu0 0.0
        %537 = vmatpush2.xpose.msra.mxu0 0.0
        %538 = vmatprep.subr.mxu0 0.0
        %539 = vmatpush2.xpose.msra.mxu0 0.0
        %540 = vmatprep.subr.mxu0 0.0
        %541 = vmatpush2.xpose.msra.mxu0 0.0
        %542 = vmatprep.subr.mxu0 0.0
        %543 = vmatpush2.xpose.msra.mxu0 0.0
        %544 = vmatprep.subr.mxu0 0.0
        %545 = vmatpush2.xpose.msra.mxu0 0.0
        %546 = vmatprep.subr.mxu0 0.0
        %547 = vmatpush2.xpose.msra.mxu0 0.0
        %548 = vmatprep.subr.mxu0 0.0
        %549 = vmatpush2.xpose.msra.mxu0 0.0
        %550 = vmatprep.subr.mxu0 0.0
        %551 = vmatpush2.xpose.msra.mxu0 0.0
        %552 = vmatprep.subr.mxu0 0.0
        %553 = vmatpush2.xpose.msra.mxu0 0.0
        %554 = vmatprep.subr.mxu0 0.0
        %555 = vmatpush2.xpose.msra.mxu0 0.0
        %556 = vmatprep.subr.mxu0 0.0
        %557 = vmatpush2.xpose.msra.mxu0 0.0
        %558 = vmatprep.subr.mxu0 0.0
        %559 = vmatpush2.xpose.msra.mxu0 0.0
        %560 = vmatprep.subr.mxu0 0.0
        %561 = vmatpush2.xpose.msra.mxu0 0.0
        %562 = vmatprep.subr.mxu0 0.0
        %563 = vmatpush2.xpose.msra.mxu0 0.0
        %564 = vmatprep.subr.mxu0 0.0
        %565 = vmatpush2.xpose.msra.mxu0 0.0
        %566 = vmatprep.mubr.f32.mxu0 0.0
        %567 = vmatmul.mubr.f32.gmra.mxu0 %v498
        %v568 = vpop.f32.mrf.mxu0
        %v569 = vadd.f32 0.0, %v568
        %v570 = vpop.f32.mrf.mxu0
        %571 = vdwg.mxu0
        %v572 = vmul.f32 %v569, 0.5
        %v573 = vsel %vm403, %v572, -inf
        %574 = vmax.xlane.f32.xlu0 %v573
        %v575 = vpop.xlane.xlu0 %574
        %v576 = vsub.f32 %v572, %v575
        %v577 = vmul.f32 %v576, 1.442695
        %v578 = vpow.pop %v577
        %v579 = vsel %vm403, %v578, 0.0
        %580 = vadd.xlane.f32.xlu0 %v579
        %v581 = vpop.xlane.xlu0 %580
        %v582 = vrcp.pop %v581
        %v583 = vmul.f32 %v578, %v582
        %584 = vrot.lane.b32.xlu0 %v492, 60
        %v585 = vpop.permute.xlu0 %584
        %v588 = vsel %vm403, %v583, 0
        %590 = vmatprep.subr.mxu0 0.0
        %591 = vmatpush1.msra.mxu0 0.0
        %592 = vmatprep.subr.mxu0 0.0
        %593 = vmatpush1.msra.mxu0 0.0
        %594 = vmatprep.subr.mxu0 0.0
        %595 = vmatpush1.msra.mxu0 0.0
        %596 = vmatprep.subr.mxu0 0.0
        %597 = vmatpush1.msra.mxu0 0.0
        %598 = vmatprep.subr.mxu0 0.0
        %599 = vmatpush1.msra.mxu0 0.0
        %600 = vmatprep.subr.mxu0 0.0
        %601 = vmatpush1.msra.mxu0 0.0
        %602 = vmatprep.subr.mxu0 0.0
        %603 = vmatpush1.msra.mxu0 0.0
        %604 = vmatprep.subr.mxu0 0.0
        %605 = vmatpush1.msra.mxu0 0.0
        %606 = vmatprep.subr.mxu0 0.0
        %607 = vmatpush1.msra.mxu0 0.0
        %608 = vmatprep.subr.mxu0 0.0
        %609 = vmatpush1.msra.mxu0 0.0
        %610 = vmatprep.subr.mxu0 0.0
        %611 = vmatpush1.msra.mxu0 0.0
        %612 = vmatprep.subr.mxu0 0.0
        %613 = vmatpush1.msra.mxu0 0.0
        %614 = vmatprep.subr.mxu0 0.0
        %615 = vmatpush1.msra.mxu0 0.0
        %616 = vmatprep.subr.mxu0 0.0
        %617 = vmatpush1.msra.mxu0 0.0
        %618 = vmatprep.subr.mxu0 0.0
        %619 = vmatpush1.msra.mxu0 0.0
        %620 = vmatprep.subr.mxu0 0.0
        %621 = vmatpush1.msra.mxu0 %v585
        %622 = vmatprep.subr.mxu0 0.0
        %623 = vmatpush2.msra.mxu0 0.0
        %624 = vmatprep.subr.mxu0 0.0
        %625 = vmatpush2.msra.mxu0 0.0
        %626 = vmatprep.subr.mxu0 0.0
        %627 = vmatpush2.msra.mxu0 0.0
        %628 = vmatprep.subr.mxu0 0.0
        %629 = vmatpush2.msra.mxu0 0.0
        %630 = vmatprep.subr.mxu0 0.0
        %631 = vmatpush2.msra.mxu0 0.0
        %632 = vmatprep.subr.mxu0 0.0
        %633 = vmatpush2.msra.mxu0 0.0
        %634 = vmatprep.subr.mxu0 0.0
        %635 = vmatpush2.msra.mxu0 0.0
        %636 = vmatprep.subr.mxu0 0.0
        %637 = vmatpush2.msra.mxu0 0.0
        %638 = vmatprep.subr.mxu0 0.0
        %639 = vmatpush2.msra.mxu0 0.0
        %640 = vmatprep.subr.mxu0 0.0
        %641 = vmatpush2.msra.mxu0 0.0
        %642 = vmatprep.subr.mxu0 0.0
        %643 = vmatpush2.msra.mxu0 0.0
        %644 = vmatprep.subr.mxu0 0.0
        %645 = vmatpush2.msra.mxu0 0.0
        %646 = vmatprep.subr.mxu0 0.0
        %647 = vmatpush2.msra.mxu0 0.0
        %648 = vmatprep.subr.mxu0 0.0
        %649 = vmatpush2.msra.mxu0 0.0
        %650 = vmatprep.subr.mxu0 0.0
        %651 = vmatpush2.msra.mxu0 0.0
        %652 = vmatprep.subr.mxu0 0.0
        %653 = vmatpush2.msra.mxu0 0.0
        %654 = vmatprep.mubr.f32.mxu0 0.0
        %655 = vmatmul.mubr.f32.gmra.mxu0 %v588
        %v656 = vpop.f32.mrf.mxu0
        %v657 = vadd.f32 0.0, %v656
        %v658 = vpop.f32.mrf.mxu0
        %659 = vdwg.mxu0
        %661 = vrot.lane.b32.xlu0 %v657, 4
        %v662 = vpop.permute.xlu0 %661
        %vm664 = vcmask 64544
        %665 = vst.msk [vmem:[#allocation3] sm:$0xff] %vm664, %v662
        %v666 = vld [vmem:[#allocation2] sm:$0xff]
        %668 = vrot.lane.b32.xlu0 %v666, 120
        %v669 = vpop.permute.xlu0 %668
        %670 = vrot.lane.b32.xlu0 %v666, 88
        %v671 = vpop.permute.xlu0 %670
        %v672 = vsel %vm327, %v669, 0
        %v674 = vsel %vm327, %v671, 0
        %676 = vmatprep.subr.mxu0 0.0
        %677 = vmatpush1.xpose.msra.mxu0 0.0
        %678 = vmatprep.subr.mxu0 0.0
        %679 = vmatpush1.xpose.msra.mxu0 0.0
        %680 = vmatprep.subr.mxu0 0.0
        %681 = vmatpush1.xpose.msra.mxu0 0.0
        %682 = vmatprep.subr.mxu0 0.0
        %683 = vmatpush1.xpose.msra.mxu0 0.0
        %684 = vmatprep.subr.mxu0 0.0
        %685 = vmatpush1.xpose.msra.mxu0 0.0
        %686 = vmatprep.subr.mxu0 0.0
        %687 = vmatpush1.xpose.msra.mxu0 0.0
        %688 = vmatprep.subr.mxu0 0.0
        %689 = vmatpush1.xpose.msra.mxu0 0.0
        %690 = vmatprep.subr.mxu0 0.0
        %691 = vmatpush1.xpose.msra.mxu0 0.0
        %692 = vmatprep.subr.mxu0 0.0
        %693 = vmatpush1.xpose.msra.mxu0 0.0
        %694 = vmatprep.subr.mxu0 0.0
        %695 = vmatpush1.xpose.msra.mxu0 0.0
        %696 = vmatprep.subr.mxu0 0.0
        %697 = vmatpush1.xpose.msra.mxu0 0.0
        %698 = vmatprep.subr.mxu0 0.0
        %699 = vmatpush1.xpose.msra.mxu0 0.0
        %700 = vmatprep.subr.mxu0 0.0
        %701 = vmatpush1.xpose.msra.mxu0 0.0
        %702 = vmatprep.subr.mxu0 0.0
        %703 = vmatpush1.xpose.msra.mxu0 0.0
        %704 = vmatprep.subr.mxu0 0.0
        %705 = vmatpush1.xpose.msra.mxu0 0.0
        %706 = vmatprep.subr.mxu0 0.0
        %707 = vmatpush1.xpose.msra.mxu0 %v674
        %708 = vmatprep.subr.mxu0 0.0
        %709 = vmatpush2.xpose.msra.mxu0 0.0
        %710 = vmatprep.subr.mxu0 0.0
        %711 = vmatpush2.xpose.msra.mxu0 0.0
        %712 = vmatprep.subr.mxu0 0.0
        %713 = vmatpush2.xpose.msra.mxu0 0.0
        %714 = vmatprep.subr.mxu0 0.0
        %715 = vmatpush2.xpose.msra.mxu0 0.0
        %716 = vmatprep.subr.mxu0 0.0
        %717 = vmatpush2.xpose.msra.mxu0 0.0
        %718 = vmatprep.subr.mxu0 0.0
        %719 = vmatpush2.xpose.msra.mxu0 0.0
        %720 = vmatprep.subr.mxu0 0.0
        %721 = vmatpush2.xpose.msra.mxu0 0.0
        %722 = vmatprep.subr.mxu0 0.0
        %723 = vmatpush2.xpose.msra.mxu0 0.0
        %724 = vmatprep.subr.mxu0 0.0
        %725 = vmatpush2.xpose.msra.mxu0 0.0
        %726 = vmatprep.subr.mxu0 0.0
        %727 = vmatpush2.xpose.msra.mxu0 0.0
        %728 = vmatprep.subr.mxu0 0.0
        %729 = vmatpush2.xpose.msra.mxu0 0.0
        %730 = vmatprep.subr.mxu0 0.0
        %731 = vmatpush2.xpose.msra.mxu0 0.0
        %732 = vmatprep.subr.mxu0 0.0
        %733 = vmatpush2.xpose.msra.mxu0 0.0
        %734 = vmatprep.subr.mxu0 0.0
        %735 = vmatpush2.xpose.msra.mxu0 0.0
        %736 = vmatprep.subr.mxu0 0.0
        %737 = vmatpush2.xpose.msra.mxu0 0.0
        %738 = vmatprep.subr.mxu0 0.0
        %739 = vmatpush2.xpose.msra.mxu0 0.0
        %740 = vmatprep.mubr.f32.mxu0 0.0
        %741 = vmatmul.mubr.f32.gmra.mxu0 %v672
        %v742 = vpop.f32.mrf.mxu0
        %v743 = vadd.f32 0.0, %v742
        %v744 = vpop.f32.mrf.mxu0
        %745 = vdwg.mxu0
        %v746 = vmul.f32 %v743, 0.5
        %v747 = vsel %vm403, %v746, -inf
        %748 = vmax.xlane.f32.xlu0 %v747
        %v749 = vpop.xlane.xlu0 %748
        %v750 = vsub.f32 %v746, %v749
        %v751 = vmul.f32 %v750, 1.442695
        %v752 = vpow.pop %v751
        %v753 = vsel %vm403, %v752, 0.0
        %754 = vadd.xlane.f32.xlu0 %v753
        %v755 = vpop.xlane.xlu0 %754
        %v756 = vrcp.pop %v755
        %v757 = vmul.f32 %v752, %v756
        %758 = vrot.lane.b32.xlu0 %v666, 56
        %v759 = vpop.permute.xlu0 %758
        %v762 = vsel %vm403, %v757, 0
        %764 = vmatprep.subr.mxu0 0.0
        %765 = vmatpush1.msra.mxu0 0.0
        %766 = vmatprep.subr.mxu0 0.0
        %767 = vmatpush1.msra.mxu0 0.0
        %768 = vmatprep.subr.mxu0 0.0
        %769 = vmatpush1.msra.mxu0 0.0
        %770 = vmatprep.subr.mxu0 0.0
        %771 = vmatpush1.msra.mxu0 0.0
        %772 = vmatprep.subr.mxu0 0.0
        %773 = vmatpush1.msra.mxu0 0.0
        %774 = vmatprep.subr.mxu0 0.0
        %775 = vmatpush1.msra.mxu0 0.0
        %776 = vmatprep.subr.mxu0 0.0
        %777 = vmatpush1.msra.mxu0 0.0
        %778 = vmatprep.subr.mxu0 0.0
        %779 = vmatpush1.msra.mxu0 0.0
        %780 = vmatprep.subr.mxu0 0.0
        %781 = vmatpush1.msra.mxu0 0.0
        %782 = vmatprep.subr.mxu0 0.0
        %783 = vmatpush1.msra.mxu0 0.0
        %784 = vmatprep.subr.mxu0 0.0
        %785 = vmatpush1.msra.mxu0 0.0
        %786 = vmatprep.subr.mxu0 0.0
        %787 = vmatpush1.msra.mxu0 0.0
        %788 = vmatprep.subr.mxu0 0.0
        %789 = vmatpush1.msra.mxu0 0.0
        %790 = vmatprep.subr.mxu0 0.0
        %791 = vmatpush1.msra.mxu0 0.0
        %792 = vmatprep.subr.mxu0 0.0
        %793 = vmatpush1.msra.mxu0 0.0
        %794 = vmatprep.subr.mxu0 0.0
        %795 = vmatpush1.msra.mxu0 %v759
        %796 = vmatprep.subr.mxu0 0.0
        %797 = vmatpush2.msra.mxu0 0.0
        %798 = vmatprep.subr.mxu0 0.0
        %799 = vmatpush2.msra.mxu0 0.0
        %800 = vmatprep.subr.mxu0 0.0
        %801 = vmatpush2.msra.mxu0 0.0
        %802 = vmatprep.subr.mxu0 0.0
        %803 = vmatpush2.msra.mxu0 0.0
        %804 = vmatprep.subr.mxu0 0.0
        %805 = vmatpush2.msra.mxu0 0.0
        %806 = vmatprep.subr.mxu0 0.0
        %807 = vmatpush2.msra.mxu0 0.0
        %808 = vmatprep.subr.mxu0 0.0
        %809 = vmatpush2.msra.mxu0 0.0
        %810 = vmatprep.subr.mxu0 0.0
        %811 = vmatpush2.msra.mxu0 0.0
        %812 = vmatprep.subr.mxu0 0.0
        %813 = vmatpush2.msra.mxu0 0.0
        %814 = vmatprep.subr.mxu0 0.0
        %815 = vmatpush2.msra.mxu0 0.0
        %816 = vmatprep.subr.mxu0 0.0
        %817 = vmatpush2.msra.mxu0 0.0
        %818 = vmatprep.subr.mxu0 0.0
        %819 = vmatpush2.msra.mxu0 0.0
        %820 = vmatprep.subr.mxu0 0.0
        %821 = vmatpush2.msra.mxu0 0.0
        %822 = vmatprep.subr.mxu0 0.0
        %823 = vmatpush2.msra.mxu0 0.0
        %824 = vmatprep.subr.mxu0 0.0
        %825 = vmatpush2.msra.mxu0 0.0
        %826 = vmatprep.subr.mxu0 0.0
        %827 = vmatpush2.msra.mxu0 0.0
        %828 = vmatprep.mubr.f32.mxu0 0.0
        %829 = vmatmul.mubr.f32.gmra.mxu0 %v762
        %v830 = vpop.f32.mrf.mxu0
        %v831 = vadd.f32 0.0, %v830
        %v832 = vpop.f32.mrf.mxu0
        %833 = vdwg.mxu0
        %835 = vrot.lane.b32.xlu0 %v831, 8
        %v836 = vpop.permute.xlu0 %835
        %vm838 = vcmask 97344
        %839 = vst.msk [vmem:[#allocation3] sm:$0xff] %vm838, %v836
        %v840 = vld [vmem:[#allocation2] sm:$0xff]
        %842 = vrot.lane.b32.xlu0 %v840, 116
        %v843 = vpop.permute.xlu0 %842
        %844 = vrot.lane.b32.xlu0 %v840, 84
        %v845 = vpop.permute.xlu0 %844
        %v846 = vsel %vm327, %v843, 0
        %v848 = vsel %vm327, %v845, 0
        %850 = vmatprep.subr.mxu0 0.0
        %851 = vmatpush1.xpose.msra.mxu0 0.0
        %852 = vmatprep.subr.mxu0 0.0
        %853 = vmatpush1.xpose.msra.mxu0 0.0
        %854 = vmatprep.subr.mxu0 0.0
        %855 = vmatpush1.xpose.msra.mxu0 0.0
        %856 = vmatprep.subr.mxu0 0.0
        %857 = vmatpush1.xpose.msra.mxu0 0.0
        %858 = vmatprep.subr.mxu0 0.0
        %859 = vmatpush1.xpose.msra.mxu0 0.0
        %860 = vmatprep.subr.mxu0 0.0
        %861 = vmatpush1.xpose.msra.mxu0 0.0
        %862 = vmatprep.subr.mxu0 0.0
        %863 = vmatpush1.xpose.msra.mxu0 0.0
        %864 = vmatprep.subr.mxu0 0.0
        %865 = vmatpush1.xpose.msra.mxu0 0.0
        %866 = vmatprep.subr.mxu0 0.0
        %867 = vmatpush1.xpose.msra.mxu0 0.0
        %868 = vmatprep.subr.mxu0 0.0
        %869 = vmatpush1.xpose.msra.mxu0 0.0
        %870 = vmatprep.subr.mxu0 0.0
        %871 = vmatpush1.xpose.msra.mxu0 0.0
        %872 = vmatprep.subr.mxu0 0.0
        %873 = vmatpush1.xpose.msra.mxu0 0.0
        %874 = vmatprep.subr.mxu0 0.0
        %875 = vmatpush1.xpose.msra.mxu0 0.0
        %876 = vmatprep.subr.mxu0 0.0
        %877 = vmatpush1.xpose.msra.mxu0 0.0
        %878 = vmatprep.subr.mxu0 0.0
        %879 = vmatpush1.xpose.msra.mxu0 0.0
        %880 = vmatprep.subr.mxu0 0.0
        %881 = vmatpush1.xpose.msra.mxu0 %v848
        %882 = vmatprep.subr.mxu0 0.0
        %883 = vmatpush2.xpose.msra.mxu0 0.0
        %884 = vmatprep.subr.mxu0 0.0
        %885 = vmatpush2.xpose.msra.mxu0 0.0
        %886 = vmatprep.subr.mxu0 0.0
        %887 = vmatpush2.xpose.msra.mxu0 0.0
        %888 = vmatprep.subr.mxu0 0.0
        %889 = vmatpush2.xpose.msra.mxu0 0.0
        %890 = vmatprep.subr.mxu0 0.0
        %891 = vmatpush2.xpose.msra.mxu0 0.0
        %892 = vmatprep.subr.mxu0 0.0
        %893 = vmatpush2.xpose.msra.mxu0 0.0
        %894 = vmatprep.subr.mxu0 0.0
        %895 = vmatpush2.xpose.msra.mxu0 0.0
        %896 = vmatprep.subr.mxu0 0.0
        %897 = vmatpush2.xpose.msra.mxu0 0.0
        %898 = vmatprep.subr.mxu0 0.0
        %899 = vmatpush2.xpose.msra.mxu0 0.0
        %900 = vmatprep.subr.mxu0 0.0
        %901 = vmatpush2.xpose.msra.mxu0 0.0
        %902 = vmatprep.subr.mxu0 0.0
        %903 = vmatpush2.xpose.msra.mxu0 0.0
        %904 = vmatprep.subr.mxu0 0.0
        %905 = vmatpush2.xpose.msra.mxu0 0.0
        %906 = vmatprep.subr.mxu0 0.0
        %907 = vmatpush2.xpose.msra.mxu0 0.0
        %908 = vmatprep.subr.mxu0 0.0
        %909 = vmatpush2.xpose.msra.mxu0 0.0
        %910 = vmatprep.subr.mxu0 0.0
        %911 = vmatpush2.xpose.msra.mxu0 0.0
        %912 = vmatprep.subr.mxu0 0.0
        %913 = vmatpush2.xpose.msra.mxu0 0.0
        %914 = vmatprep.mubr.f32.mxu0 0.0
        %915 = vmatmul.mubr.f32.gmra.mxu0 %v846
        %v916 = vpop.f32.mrf.mxu0
        %v917 = vadd.f32 0.0, %v916
        %v918 = vpop.f32.mrf.mxu0
        %919 = vdwg.mxu0
        %v920 = vmul.f32 %v917, 0.5
        %v921 = vsel %vm403, %v920, -inf
        %922 = vmax.xlane.f32.xlu0 %v921
        %v923 = vpop.xlane.xlu0 %922
        %v924 = vsub.f32 %v920, %v923
        %v925 = vmul.f32 %v924, 1.442695
        %v926 = vpow.pop %v925
        %v927 = vsel %vm403, %v926, 0.0
        %928 = vadd.xlane.f32.xlu0 %v927
        %v929 = vpop.xlane.xlu0 %928
        %v930 = vrcp.pop %v929
        %v931 = vmul.f32 %v926, %v930
        %932 = vrot.lane.b32.xlu0 %v840, 52
        %v933 = vpop.permute.xlu0 %932
        %v936 = vsel %vm403, %v931, 0
        %938 = vmatprep.subr.mxu0 0.0
        %939 = vmatpush1.msra.mxu0 0.0
        %940 = vmatprep.subr.mxu0 0.0
        %941 = vmatpush1.msra.mxu0 0.0
        %942 = vmatprep.subr.mxu0 0.0
        %943 = vmatpush1.msra.mxu0 0.0
        %944 = vmatprep.subr.mxu0 0.0
        %945 = vmatpush1.msra.mxu0 0.0
        %946 = vmatprep.subr.mxu0 0.0
        %947 = vmatpush1.msra.mxu0 0.0
        %948 = vmatprep.subr.mxu0 0.0
        %949 = vmatpush1.msra.mxu0 0.0
        %950 = vmatprep.subr.mxu0 0.0
        %951 = vmatpush1.msra.mxu0 0.0
        %952 = vmatprep.subr.mxu0 0.0
        %953 = vmatpush1.msra.mxu0 0.0
        %954 = vmatprep.subr.mxu0 0.0
        %955 = vmatpush1.msra.mxu0 0.0
        %956 = vmatprep.subr.mxu0 0.0
        %957 = vmatpush1.msra.mxu0 0.0
        %958 = vmatprep.subr.mxu0 0.0
        %959 = vmatpush1.msra.mxu0 0.0
        %960 = vmatprep.subr.mxu0 0.0
        %961 = vmatpush1.msra.mxu0 0.0
        %962 = vmatprep.subr.mxu0 0.0
        %963 = vmatpush1.msra.mxu0 0.0
        %964 = vmatprep.subr.mxu0 0.0
        %965 = vmatpush1.msra.mxu0 0.0
        %966 = vmatprep.subr.mxu0 0.0
        %967 = vmatpush1.msra.mxu0 0.0
        %968 = vmatprep.subr.mxu0 0.0
        %969 = vmatpush1.msra.mxu0 %v933
        %970 = vmatprep.subr.mxu0 0.0
        %971 = vmatpush2.msra.mxu0 0.0
        %972 = vmatprep.subr.mxu0 0.0
        %973 = vmatpush2.msra.mxu0 0.0
        %974 = vmatprep.subr.mxu0 0.0
        %975 = vmatpush2.msra.mxu0 0.0
        %976 = vmatprep.subr.mxu0 0.0
        %977 = vmatpush2.msra.mxu0 0.0
        %978 = vmatprep.subr.mxu0 0.0
        %979 = vmatpush2.msra.mxu0 0.0
        %980 = vmatprep.subr.mxu0 0.0
        %981 = vmatpush2.msra.mxu0 0.0
        %982 = vmatprep.subr.mxu0 0.0
        %983 = vmatpush2.msra.mxu0 0.0
        %984 = vmatprep.subr.mxu0 0.0
        %985 = vmatpush2.msra.mxu0 0.0
        %986 = vmatprep.subr.mxu0 0.0
        %987 = vmatpush2.msra.mxu0 0.0
        %988 = vmatprep.subr.mxu0 0.0
        %989 = vmatpush2.msra.mxu0 0.0
        %990 = vmatprep.subr.mxu0 0.0
        %991 = vmatpush2.msra.mxu0 0.0
        %992 = vmatprep.subr.mxu0 0.0
        %993 = vmatpush2.msra.mxu0 0.0
        %994 = vmatprep.subr.mxu0 0.0
        %995 = vmatpush2.msra.mxu0 0.0
        %996 = vmatprep.subr.mxu0 0.0
        %997 = vmatpush2.msra.mxu0 0.0
        %998 = vmatprep.subr.mxu0 0.0
        %999 = vmatpush2.msra.mxu0 0.0
        %1000 = vmatprep.subr.mxu0 0.0
        %1001 = vmatpush2.msra.mxu0 0.0
        %1002 = vmatprep.mubr.f32.mxu0 0.0
        %1003 = vmatmul.mubr.f32.gmra.mxu0 %v936
        %v1004 = vpop.f32.mrf.mxu0
        %v1005 = vadd.f32 0.0, %v1004
        %v1006 = vpop.f32.mrf.mxu0
        %1007 = vdwg.mxu0
        %1009 = vrot.lane.b32.xlu0 %v1005, 12
        %v1010 = vpop.permute.xlu0 %1009
        %vm1012 = vcmask 130144
        %1013 = vst.msk [vmem:[#allocation3] sm:$0xff] %vm1012, %v1010
        %v1014 = vld [vmem:[#allocation2] sm:$0xff]
        %1016 = vrot.lane.b32.xlu0 %v1014, 112
        %v1017 = vpop.permute.xlu0 %1016
        %1018 = vrot.lane.b32.xlu0 %v1014, 80
        %v1019 = vpop.permute.xlu0 %1018
        %v1020 = vsel %vm327, %v1017, 0
        %v1022 = vsel %vm327, %v1019, 0
        %1024 = vmatprep.subr.mxu0 0.0
        %1025 = vmatpush1.xpose.msra.mxu0 0.0
        %1026 = vmatprep.subr.mxu0 0.0
        %1027 = vmatpush1.xpose.msra.mxu0 0.0
        %1028 = vmatprep.subr.mxu0 0.0
        %1029 = vmatpush1.xpose.msra.mxu0 0.0
        %1030 = vmatprep.subr.mxu0 0.0
        %1031 = vmatpush1.xpose.msra.mxu0 0.0
        %1032 = vmatprep.subr.mxu0 0.0
        %1033 = vmatpush1.xpose.msra.mxu0 0.0
        %1034 = vmatprep.subr.mxu0 0.0
        %1035 = vmatpush1.xpose.msra.mxu0 0.0
        %1036 = vmatprep.subr.mxu0 0.0
        %1037 = vmatpush1.xpose.msra.mxu0 0.0
        %1038 = vmatprep.subr.mxu0 0.0
        %1039 = vmatpush1.xpose.msra.mxu0 0.0
        %1040 = vmatprep.subr.mxu0 0.0
        %1041 = vmatpush1.xpose.msra.mxu0 0.0
        %1042 = vmatprep.subr.mxu0 0.0
        %1043 = vmatpush1.xpose.msra.mxu0 0.0
        %1044 = vmatprep.subr.mxu0 0.0
        %1045 = vmatpush1.xpose.msra.mxu0 0.0
        %1046 = vmatprep.subr.mxu0 0.0
        %1047 = vmatpush1.xpose.msra.mxu0 0.0
        %1048 = vmatprep.subr.mxu0 0.0
        %1049 = vmatpush1.xpose.msra.mxu0 0.0
        %1050 = vmatprep.subr.mxu0 0.0
        %1051 = vmatpush1.xpose.msra.mxu0 0.0
        %1052 = vmatprep.subr.mxu0 0.0
        %1053 = vmatpush1.xpose.msra.mxu0 0.0
        %1054 = vmatprep.subr.mxu0 0.0
        %1055 = vmatpush1.xpose.msra.mxu0 %v1022
        %1056 = vmatprep.subr.mxu0 0.0
        %1057 = vmatpush2.xpose.msra.mxu0 0.0
        %1058 = vmatprep.subr.mxu0 0.0
        %1059 = vmatpush2.xpose.msra.mxu0 0.0
        %1060 = vmatprep.subr.mxu0 0.0
        %1061 = vmatpush2.xpose.msra.mxu0 0.0
        %1062 = vmatprep.subr.mxu0 0.0
        %1063 = vmatpush2.xpose.msra.mxu0 0.0
        %1064 = vmatprep.subr.mxu0 0.0
        %1065 = vmatpush2.xpose.msra.mxu0 0.0
        %1066 = vmatprep.subr.mxu0 0.0
        %1067 = vmatpush2.xpose.msra.mxu0 0.0
        %1068 = vmatprep.subr.mxu0 0.0
        %1069 = vmatpush2.xpose.msra.mxu0 0.0
        %1070 = vmatprep.subr.mxu0 0.0
        %1071 = vmatpush2.xpose.msra.mxu0 0.0
        %1072 = vmatprep.subr.mxu0 0.0
        %1073 = vmatpush2.xpose.msra.mxu0 0.0
        %1074 = vmatprep.subr.mxu0 0.0
        %1075 = vmatpush2.xpose.msra.mxu0 0.0
        %1076 = vmatprep.subr.mxu0 0.0
        %1077 = vmatpush2.xpose.msra.mxu0 0.0
        %1078 = vmatprep.subr.mxu0 0.0
        %1079 = vmatpush2.xpose.msra.mxu0 0.0
        %1080 = vmatprep.subr.mxu0 0.0
        %1081 = vmatpush2.xpose.msra.mxu0 0.0
        %1082 = vmatprep.subr.mxu0 0.0
        %1083 = vmatpush2.xpose.msra.mxu0 0.0
        %1084 = vmatprep.subr.mxu0 0.0
        %1085 = vmatpush2.xpose.msra.mxu0 0.0
        %1086 = vmatprep.subr.mxu0 0.0
        %1087 = vmatpush2.xpose.msra.mxu0 0.0
        %1088 = vmatprep.mubr.f32.mxu0 0.0
        %1089 = vmatmul.mubr.f32.gmra.mxu0 %v1020
        %v1090 = vpop.f32.mrf.mxu0
        %v1091 = vadd.f32 0.0, %v1090
        %v1092 = vpop.f32.mrf.mxu0
        %1093 = vdwg.mxu0
        %v1094 = vmul.f32 %v1091, 0.5
        %v1095 = vsel %vm403, %v1094, -inf
        %1096 = vmax.xlane.f32.xlu0 %v1095
        %v1097 = vpop.xlane.xlu0 %1096
        %v1098 = vsub.f32 %v1094, %v1097
        %v1099 = vmul.f32 %v1098, 1.442695
        %v1100 = vpow.pop %v1099
        %v1101 = vsel %vm403, %v1100, 0.0
        %1102 = vadd.xlane.f32.xlu0 %v1101
        %v1103 = vpop.xlane.xlu0 %1102
        %v1104 = vrcp.pop %v1103
        %v1105 = vmul.f32 %v1100, %v1104
        %1106 = vrot.lane.b32.xlu0 %v1014, 48
        %v1107 = vpop.permute.xlu0 %1106
        %v1110 = vsel %vm403, %v1105, 0
        %1112 = vmatprep.subr.mxu0 0.0
        %1113 = vmatpush1.msra.mxu0 0.0
        %1114 = vmatprep.subr.mxu0 0.0
        %1115 = vmatpush1.msra.mxu0 0.0
        %1116 = vmatprep.subr.mxu0 0.0
        %1117 = vmatpush1.msra.mxu0 0.0
        %1118 = vmatprep.subr.mxu0 0.0
        %1119 = vmatpush1.msra.mxu0 0.0
        %1120 = vmatprep.subr.mxu0 0.0
        %1121 = vmatpush1.msra.mxu0 0.0
        %1122 = vmatprep.subr.mxu0 0.0
        %1123 = vmatpush1.msra.mxu0 0.0
        %1124 = vmatprep.subr.mxu0 0.0
        %1125 = vmatpush1.msra.mxu0 0.0
        %1126 = vmatprep.subr.mxu0 0.0
        %1127 = vmatpush1.msra.mxu0 0.0
        %1128 = vmatprep.subr.mxu0 0.0
        %1129 = vmatpush1.msra.mxu0 0.0
        %1130 = vmatprep.subr.mxu0 0.0
        %1131 = vmatpush1.msra.mxu0 0.0
        %1132 = vmatprep.subr.mxu0 0.0
        %1133 = vmatpush1.msra.mxu0 0.0
        %1134 = vmatprep.subr.mxu0 0.0
        %1135 = vmatpush1.msra.mxu0 0.0
        %1136 = vmatprep.subr.mxu0 0.0
        %1137 = vmatpush1.msra.mxu0 0.0
        %1138 = vmatprep.subr.mxu0 0.0
        %1139 = vmatpush1.msra.mxu0 0.0
        %1140 = vmatprep.subr.mxu0 0.0
        %1141 = vmatpush1.msra.mxu0 0.0
        %1142 = vmatprep.subr.mxu0 0.0
        %1143 = vmatpush1.msra.mxu0 %v1107
        %1144 = vmatprep.subr.mxu0 0.0
        %1145 = vmatpush2.msra.mxu0 0.0
        %1146 = vmatprep.subr.mxu0 0.0
        %1147 = vmatpush2.msra.mxu0 0.0
        %1148 = vmatprep.subr.mxu0 0.0
        %1149 = vmatpush2.msra.mxu0 0.0
        %1150 = vmatprep.subr.mxu0 0.0
        %1151 = vmatpush2.msra.mxu0 0.0
        %1152 = vmatprep.subr.mxu0 0.0
        %1153 = vmatpush2.msra.mxu0 0.0
        %1154 = vmatprep.subr.mxu0 0.0
        %1155 = vmatpush2.msra.mxu0 0.0
        %1156 = vmatprep.subr.mxu0 0.0
        %1157 = vmatpush2.msra.mxu0 0.0
        %1158 = vmatprep.subr.mxu0 0.0
        %1159 = vmatpush2.msra.mxu0 0.0
        %1160 = vmatprep.subr.mxu0 0.0
        %1161 = vmatpush2.msra.mxu0 0.0
        %1162 = vmatprep.subr.mxu0 0.0
        %1163 = vmatpush2.msra.mxu0 0.0
        %1164 = vmatprep.subr.mxu0 0.0
        %1165 = vmatpush2.msra.mxu0 0.0
        %1166 = vmatprep.subr.mxu0 0.0
        %1167 = vmatpush2.msra.mxu0 0.0
        %1168 = vmatprep.subr.mxu0 0.0
        %1169 = vmatpush2.msra.mxu0 0.0
        %1170 = vmatprep.subr.mxu0 0.0
        %1171 = vmatpush2.msra.mxu0 0.0
        %1172 = vmatprep.subr.mxu0 0.0
        %1173 = vmatpush2.msra.mxu0 0.0
        %1174 = vmatprep.subr.mxu0 0.0
        %1175 = vmatpush2.msra.mxu0 0.0
        %1176 = vmatprep.mubr.f32.mxu0 0.0
        %1177 = vmatmul.mubr.f32.gmra.mxu0 %v1110
        %v1178 = vpop.f32.mrf.mxu0
        %v1179 = vadd.f32 0.0, %v1178
        %v1180 = vpop.f32.mrf.mxu0
        %1181 = vdwg.mxu0
        %1183 = vrot.lane.b32.xlu0 %v1179, 16
        %v1184 = vpop.permute.xlu0 %1183
        %vm1186 = vcmask 162944
        %1187 = vst.msk [vmem:[#allocation3] sm:$0xff] %vm1186, %v1184
        %v1188 = vld [vmem:[#allocation2] sm:$0xff]
        %1190 = vrot.lane.b32.xlu0 %v1188, 108
        %v1191 = vpop.permute.xlu0 %1190
        %1192 = vrot.lane.b32.xlu0 %v1188, 76
        %v1193 = vpop.permute.xlu0 %1192
        %v1194 = vsel %vm327, %v1191, 0
        %v1196 = vsel %vm327, %v1193, 0
        %1198 = vmatprep.subr.mxu0 0.0
        %1199 = vmatpush1.xpose.msra.mxu0 0.0
        %1200 = vmatprep.subr.mxu0 0.0
        %1201 = vmatpush1.xpose.msra.mxu0 0.0
        %1202 = vmatprep.subr.mxu0 0.0
        %1203 = vmatpush1.xpose.msra.mxu0 0.0
        %1204 = vmatprep.subr.mxu0 0.0
        %1205 = vmatpush1.xpose.msra.mxu0 0.0
        %1206 = vmatprep.subr.mxu0 0.0
        %1207 = vmatpush1.xpose.msra.mxu0 0.0
        %1208 = vmatprep.subr.mxu0 0.0
        %1209 = vmatpush1.xpose.msra.mxu0 0.0
        %1210 = vmatprep.subr.mxu0 0.0
        %1211 = vmatpush1.xpose.msra.mxu0 0.0
        %1212 = vmatprep.subr.mxu0 0.0
        %1213 = vmatpush1.xpose.msra.mxu0 0.0
        %1214 = vmatprep.subr.mxu0 0.0
        %1215 = vmatpush1.xpose.msra.mxu0 0.0
        %1216 = vmatprep.subr.mxu0 0.0
        %1217 = vmatpush1.xpose.msra.mxu0 0.0
        %1218 = vmatprep.subr.mxu0 0.0
        %1219 = vmatpush1.xpose.msra.mxu0 0.0
        %1220 = vmatprep.subr.mxu0 0.0
        %1221 = vmatpush1.xpose.msra.mxu0 0.0
        %1222 = vmatprep.subr.mxu0 0.0
        %1223 = vmatpush1.xpose.msra.mxu0 0.0
        %1224 = vmatprep.subr.mxu0 0.0
        %1225 = vmatpush1.xpose.msra.mxu0 0.0
        %1226 = vmatprep.subr.mxu0 0.0
        %1227 = vmatpush1.xpose.msra.mxu0 0.0
        %1228 = vmatprep.subr.mxu0 0.0
        %1229 = vmatpush1.xpose.msra.mxu0 %v1196
        %1230 = vmatprep.subr.mxu0 0.0
        %1231 = vmatpush2.xpose.msra.mxu0 0.0
        %1232 = vmatprep.subr.mxu0 0.0
        %1233 = vmatpush2.xpose.msra.mxu0 0.0
        %1234 = vmatprep.subr.mxu0 0.0
        %1235 = vmatpush2.xpose.msra.mxu0 0.0
        %1236 = vmatprep.subr.mxu0 0.0
        %1237 = vmatpush2.xpose.msra.mxu0 0.0
        %1238 = vmatprep.subr.mxu0 0.0
        %1239 = vmatpush2.xpose.msra.mxu0 0.0
        %1240 = vmatprep.subr.mxu0 0.0
        %1241 = vmatpush2.xpose.msra.mxu0 0.0
        %1242 = vmatprep.subr.mxu0 0.0
        %1243 = vmatpush2.xpose.msra.mxu0 0.0
        %1244 = vmatprep.subr.mxu0 0.0
        %1245 = vmatpush2.xpose.msra.mxu0 0.0
        %1246 = vmatprep.subr.mxu0 0.0
        %1247 = vmatpush2.xpose.msra.mxu0 0.0
        %1248 = vmatprep.subr.mxu0 0.0
        %1249 = vmatpush2.xpose.msra.mxu0 0.0
        %1250 = vmatprep.subr.mxu0 0.0
        %1251 = vmatpush2.xpose.msra.mxu0 0.0
        %1252 = vmatprep.subr.mxu0 0.0
        %1253 = vmatpush2.xpose.msra.mxu0 0.0
        %1254 = vmatprep.subr.mxu0 0.0
        %1255 = vmatpush2.xpose.msra.mxu0 0.0
        %1256 = vmatprep.subr.mxu0 0.0
        %1257 = vmatpush2.xpose.msra.mxu0 0.0
        %1258 = vmatprep.subr.mxu0 0.0
        %1259 = vmatpush2.xpose.msra.mxu0 0.0
        %1260 = vmatprep.subr.mxu0 0.0
        %1261 = vmatpush2.xpose.msra.mxu0 0.0
        %1262 = vmatprep.mubr.f32.mxu0 0.0
        %1263 = vmatmul.mubr.f32.gmra.mxu0 %v1194
        %v1264 = vpop.f32.mrf.mxu0
        %v1265 = vadd.f32 0.0, %v1264
        %v1266 = vpop.f32.mrf.mxu0
        %1267 = vdwg.mxu0
        %v1268 = vmul.f32 %v1265, 0.5
        %v1269 = vsel %vm403, %v1268, -inf
        %1270 = vmax.xlane.f32.xlu0 %v1269
        %v1271 = vpop.xlane.xlu0 %1270
        %v1272 = vsub.f32 %v1268, %v1271
        %v1273 = vmul.f32 %v1272, 1.442695
        %v1274 = vpow.pop %v1273
        %v1275 = vsel %vm403, %v1274, 0.0
        %1276 = vadd.xlane.f32.xlu0 %v1275
        %v1277 = vpop.xlane.xlu0 %1276
        %v1278 = vrcp.pop %v1277
        %v1279 = vmul.f32 %v1274, %v1278
        %1280 = vrot.lane.b32.xlu0 %v1188, 44
        %v1281 = vpop.permute.xlu0 %1280
        %v1284 = vsel %vm403, %v1279, 0
        %1286 = vmatprep.subr.mxu0 0.0
        %1287 = vmatpush1.msra.mxu0 0.0
        %1288 = vmatprep.subr.mxu0 0.0
        %1289 = vmatpush1.msra.mxu0 0.0
        %1290 = vmatprep.subr.mxu0 0.0
        %1291 = vmatpush1.msra.mxu0 0.0
        %1292 = vmatprep.subr.mxu0 0.0
        %1293 = vmatpush1.msra.mxu0 0.0
        %1294 = vmatprep.subr.mxu0 0.0
        %1295 = vmatpush1.msra.mxu0 0.0
        %1296 = vmatprep.subr.mxu0 0.0
        %1297 = vmatpush1.msra.mxu0 0.0
        %1298 = vmatprep.subr.mxu0 0.0
        %1299 = vmatpush1.msra.mxu0 0.0
        %1300 = vmatprep.subr.mxu0 0.0
        %1301 = vmatpush1.msra.mxu0 0.0
        %1302 = vmatprep.subr.mxu0 0.0
        %1303 = vmatpush1.msra.mxu0 0.0
        %1304 = vmatprep.subr.mxu0 0.0
        %1305 = vmatpush1.msra.mxu0 0.0
        %1306 = vmatprep.subr.mxu0 0.0
        %1307 = vmatpush1.msra.mxu0 0.0
        %1308 = vmatprep.subr.mxu0 0.0
        %1309 = vmatpush1.msra.mxu0 0.0
        %1310 = vmatprep.subr.mxu0 0.0
        %1311 = vmatpush1.msra.mxu0 0.0
        %1312 = vmatprep.subr.mxu0 0.0
        %1313 = vmatpush1.msra.mxu0 0.0
        %1314 = vmatprep.subr.mxu0 0.0
        %1315 = vmatpush1.msra.mxu0 0.0
        %1316 = vmatprep.subr.mxu0 0.0
        %1317 = vmatpush1.msra.mxu0 %v1281
        %1318 = vmatprep.subr.mxu0 0.0
        %1319 = vmatpush2.msra.mxu0 0.0
        %1320 = vmatprep.subr.mxu0 0.0
        %1321 = vmatpush2.msra.mxu0 0.0
        %1322 = vmatprep.subr.mxu0 0.0
        %1323 = vmatpush2.msra.mxu0 0.0
        %1324 = vmatprep.subr.mxu0 0.0
        %1325 = vmatpush2.msra.mxu0 0.0
        %1326 = vmatprep.subr.mxu0 0.0
        %1327 = vmatpush2.msra.mxu0 0.0
        %1328 = vmatprep.subr.mxu0 0.0
        %1329 = vmatpush2.msra.mxu0 0.0
        %1330 = vmatprep.subr.mxu0 0.0
        %1331 = vmatpush2.msra.mxu0 0.0
        %1332 = vmatprep.subr.mxu0 0.0
        %1333 = vmatpush2.msra.mxu0 0.0
        %1334 = vmatprep.subr.mxu0 0.0
        %1335 = vmatpush2.msra.mxu0 0.0
        %1336 = vmatprep.subr.mxu0 0.0
        %1337 = vmatpush2.msra.mxu0 0.0
        %1338 = vmatprep.subr.mxu0 0.0
        %1339 = vmatpush2.msra.mxu0 0.0
        %1340 = vmatprep.subr.mxu0 0.0
        %1341 = vmatpush2.msra.mxu0 0.0
        %1342 = vmatprep.subr.mxu0 0.0
        %1343 = vmatpush2.msra.mxu0 0.0
        %1344 = vmatprep.subr.mxu0 0.0
        %1345 = vmatpush2.msra.mxu0 0.0
        %1346 = vmatprep.subr.mxu0 0.0
        %1347 = vmatpush2.msra.mxu0 0.0
        %1348 = vmatprep.subr.mxu0 0.0
        %1349 = vmatpush2.msra.mxu0 0.0
        %1350 = vmatprep.mubr.f32.mxu0 0.0
        %1351 = vmatmul.mubr.f32.gmra.mxu0 %v1284
        %v1352 = vpop.f32.mrf.mxu0
        %v1353 = vadd.f32 0.0, %v1352
        %v1354 = vpop.f32.mrf.mxu0
        %1355 = vdwg.mxu0
        %1357 = vrot.lane.b32.xlu0 %v1353, 20
        %v1358 = vpop.permute.xlu0 %1357
        %vm1360 = vcmask 195744
        %1361 = vst.msk [vmem:[#allocation3] sm:$0xff] %vm1360, %v1358
        %v1362 = vld [vmem:[#allocation2] sm:$0xff]
        %1364 = vrot.lane.b32.xlu0 %v1362, 104
        %v1365 = vpop.permute.xlu0 %1364
        %1366 = vrot.lane.b32.xlu0 %v1362, 72
        %v1367 = vpop.permute.xlu0 %1366
        %v1368 = vsel %vm327, %v1365, 0
        %v1370 = vsel %vm327, %v1367, 0
        %1372 = vmatprep.subr.mxu0 0.0
        %1373 = vmatpush1.xpose.msra.mxu0 0.0
        %1374 = vmatprep.subr.mxu0 0.0
        %1375 = vmatpush1.xpose.msra.mxu0 0.0
        %1376 = vmatprep.subr.mxu0 0.0
        %1377 = vmatpush1.xpose.msra.mxu0 0.0
        %1378 = vmatprep.subr.mxu0 0.0
        %1379 = vmatpush1.xpose.msra.mxu0 0.0
        %1380 = vmatprep.subr.mxu0 0.0
        %1381 = vmatpush1.xpose.msra.mxu0 0.0
        %1382 = vmatprep.subr.mxu0 0.0
        %1383 = vmatpush1.xpose.msra.mxu0 0.0
        %1384 = vmatprep.subr.mxu0 0.0
        %1385 = vmatpush1.xpose.msra.mxu0 0.0
        %1386 = vmatprep.subr.mxu0 0.0
        %1387 = vmatpush1.xpose.msra.mxu0 0.0
        %1388 = vmatprep.subr.mxu0 0.0
        %1389 = vmatpush1.xpose.msra.mxu0 0.0
        %1390 = vmatprep.subr.mxu0 0.0
        %1391 = vmatpush1.xpose.msra.mxu0 0.0
        %1392 = vmatprep.subr.mxu0 0.0
        %1393 = vmatpush1.xpose.msra.mxu0 0.0
        %1394 = vmatprep.subr.mxu0 0.0
        %1395 = vmatpush1.xpose.msra.mxu0 0.0
        %1396 = vmatprep.subr.mxu0 0.0
        %1397 = vmatpush1.xpose.msra.mxu0 0.0
        %1398 = vmatprep.subr.mxu0 0.0
        %1399 = vmatpush1.xpose.msra.mxu0 0.0
        %1400 = vmatprep.subr.mxu0 0.0
        %1401 = vmatpush1.xpose.msra.mxu0 0.0
        %1402 = vmatprep.subr.mxu0 0.0
        %1403 = vmatpush1.xpose.msra.mxu0 %v1370
        %1404 = vmatprep.subr.mxu0 0.0
        %1405 = vmatpush2.xpose.msra.mxu0 0.0
        %1406 = vmatprep.subr.mxu0 0.0
        %1407 = vmatpush2.xpose.msra.mxu0 0.0
        %1408 = vmatprep.subr.mxu0 0.0
        %1409 = vmatpush2.xpose.msra.mxu0 0.0
        %1410 = vmatprep.subr.mxu0 0.0
        %1411 = vmatpush2.xpose.msra.mxu0 0.0
        %1412 = vmatprep.subr.mxu0 0.0
        %1413 = vmatpush2.xpose.msra.mxu0 0.0
        %1414 = vmatprep.subr.mxu0 0.0
        %1415 = vmatpush2.xpose.msra.mxu0 0.0
        %1416 = vmatprep.subr.mxu0 0.0
        %1417 = vmatpush2.xpose.msra.mxu0 0.0
        %1418 = vmatprep.subr.mxu0 0.0
        %1419 = vmatpush2.xpose.msra.mxu0 0.0
        %1420 = vmatprep.subr.mxu0 0.0
        %1421 = vmatpush2.xpose.msra.mxu0 0.0
        %1422 = vmatprep.subr.mxu0 0.0
        %1423 = vmatpush2.xpose.msra.mxu0 0.0
        %1424 = vmatprep.subr.mxu0 0.0
        %1425 = vmatpush2.xpose.msra.mxu0 0.0
        %1426 = vmatprep.subr.mxu0 0.0
        %1427 = vmatpush2.xpose.msra.mxu0 0.0
        %1428 = vmatprep.subr.mxu0 0.0
        %1429 = vmatpush2.xpose.msra.mxu0 0.0
        %1430 = vmatprep.subr.mxu0 0.0
        %1431 = vmatpush2.xpose.msra.mxu0 0.0
        %1432 = vmatprep.subr.mxu0 0.0
        %1433 = vmatpush2.xpose.msra.mxu0 0.0
        %1434 = vmatprep.subr.mxu0 0.0
        %1435 = vmatpush2.xpose.msra.mxu0 0.0
        %1436 = vmatprep.mubr.f32.mxu0 0.0
        %1437 = vmatmul.mubr.f32.gmra.mxu0 %v1368
        %v1438 = vpop.f32.mrf.mxu0
        %v1439 = vadd.f32 0.0, %v1438
        %v1440 = vpop.f32.mrf.mxu0
        %1441 = vdwg.mxu0
        %v1442 = vmul.f32 %v1439, 0.5
        %v1443 = vsel %vm403, %v1442, -inf
        %1444 = vmax.xlane.f32.xlu0 %v1443
        %v1445 = vpop.xlane.xlu0 %1444
        %v1446 = vsub.f32 %v1442, %v1445
        %v1447 = vmul.f32 %v1446, 1.442695
        %v1448 = vpow.pop %v1447
        %v1449 = vsel %vm403, %v1448, 0.0
        %1450 = vadd.xlane.f32.xlu0 %v1449
        %v1451 = vpop.xlane.xlu0 %1450
        %v1452 = vrcp.pop %v1451
        %v1453 = vmul.f32 %v1448, %v1452
        %1454 = vrot.lane.b32.xlu0 %v1362, 40
        %v1455 = vpop.permute.xlu0 %1454
        %v1458 = vsel %vm403, %v1453, 0
        %1460 = vmatprep.subr.mxu0 0.0
        %1461 = vmatpush1.msra.mxu0 0.0
        %1462 = vmatprep.subr.mxu0 0.0
        %1463 = vmatpush1.msra.mxu0 0.0
        %1464 = vmatprep.subr.mxu0 0.0
        %1465 = vmatpush1.msra.mxu0 0.0
        %1466 = vmatprep.subr.mxu0 0.0
        %1467 = vmatpush1.msra.mxu0 0.0
        %1468 = vmatprep.subr.mxu0 0.0
        %1469 = vmatpush1.msra.mxu0 0.0
        %1470 = vmatprep.subr.mxu0 0.0
        %1471 = vmatpush1.msra.mxu0 0.0
        %1472 = vmatprep.subr.mxu0 0.0
        %1473 = vmatpush1.msra.mxu0 0.0
        %1474 = vmatprep.subr.mxu0 0.0
        %1475 = vmatpush1.msra.mxu0 0.0
        %1476 = vmatprep.subr.mxu0 0.0
        %1477 = vmatpush1.msra.mxu0 0.0
        %1478 = vmatprep.subr.mxu0 0.0
        %1479 = vmatpush1.msra.mxu0 0.0
        %1480 = vmatprep.subr.mxu0 0.0
        %1481 = vmatpush1.msra.mxu0 0.0
        %1482 = vmatprep.subr.mxu0 0.0
        %1483 = vmatpush1.msra.mxu0 0.0
        %1484 = vmatprep.subr.mxu0 0.0
        %1485 = vmatpush1.msra.mxu0 0.0
        %1486 = vmatprep.subr.mxu0 0.0
        %1487 = vmatpush1.msra.mxu0 0.0
        %1488 = vmatprep.subr.mxu0 0.0
        %1489 = vmatpush1.msra.mxu0 0.0
        %1490 = vmatprep.subr.mxu0 0.0
        %1491 = vmatpush1.msra.mxu0 %v1455
        %1492 = vmatprep.subr.mxu0 0.0
        %1493 = vmatpush2.msra.mxu0 0.0
        %1494 = vmatprep.subr.mxu0 0.0
        %1495 = vmatpush2.msra.mxu0 0.0
        %1496 = vmatprep.subr.mxu0 0.0
        %1497 = vmatpush2.msra.mxu0 0.0
        %1498 = vmatprep.subr.mxu0 0.0
        %1499 = vmatpush2.msra.mxu0 0.0
        %1500 = vmatprep.subr.mxu0 0.0
        %1501 = vmatpush2.msra.mxu0 0.0
        %1502 = vmatprep.subr.mxu0 0.0
        %1503 = vmatpush2.msra.mxu0 0.0
        %1504 = vmatprep.subr.mxu0 0.0
        %1505 = vmatpush2.msra.mxu0 0.0
        %1506 = vmatprep.subr.mxu0 0.0
        %1507 = vmatpush2.msra.mxu0 0.0
        %1508 = vmatprep.subr.mxu0 0.0
        %1509 = vmatpush2.msra.mxu0 0.0
        %1510 = vmatprep.subr.mxu0 0.0
        %1511 = vmatpush2.msra.mxu0 0.0
        %1512 = vmatprep.subr.mxu0 0.0
        %1513 = vmatpush2.msra.mxu0 0.0
        %1514 = vmatprep.subr.mxu0 0.0
        %1515 = vmatpush2.msra.mxu0 0.0
        %1516 = vmatprep.subr.mxu0 0.0
        %1517 = vmatpush2.msra.mxu0 0.0
        %1518 = vmatprep.subr.mxu0 0.0
        %1519 = vmatpush2.msra.mxu0 0.0
        %1520 = vmatprep.subr.mxu0 0.0
        %1521 = vmatpush2.msra.mxu0 0.0
        %1522 = vmatprep.subr.mxu0 0.0
        %1523 = vmatpush2.msra.mxu0 0.0
        %1524 = vmatprep.mubr.f32.mxu0 0.0
        %1525 = vmatmul.mubr.f32.gmra.mxu0 %v1458
        %v1526 = vpop.f32.mrf.mxu0
        %v1527 = vadd.f32 0.0, %v1526
        %v1528 = vpop.f32.mrf.mxu0
        %1529 = vdwg.mxu0
        %1531 = vrot.lane.b32.xlu0 %v1527, 24
        %v1532 = vpop.permute.xlu0 %1531
        %vm1534 = vcmask 228544
        %1535 = vst.msk [vmem:[#allocation3] sm:$0xff] %vm1534, %v1532
        %v1536 = vld [vmem:[#allocation2] sm:$0xff]
        %1538 = vrot.lane.b32.xlu0 %v1536, 100
        %v1539 = vpop.permute.xlu0 %1538
        %1540 = vrot.lane.b32.xlu0 %v1536, 68
        %v1541 = vpop.permute.xlu0 %1540
        %v1542 = vsel %vm327, %v1539, 0
        %v1544 = vsel %vm327, %v1541, 0
        %1546 = vmatprep.subr.mxu0 0.0
        %1547 = vmatpush1.xpose.msra.mxu0 0.0
        %1548 = vmatprep.subr.mxu0 0.0
        %1549 = vmatpush1.xpose.msra.mxu0 0.0
        %1550 = vmatprep.subr.mxu0 0.0
        %1551 = vmatpush1.xpose.msra.mxu0 0.0
        %1552 = vmatprep.subr.mxu0 0.0
        %1553 = vmatpush1.xpose.msra.mxu0 0.0
        %1554 = vmatprep.subr.mxu0 0.0
        %1555 = vmatpush1.xpose.msra.mxu0 0.0
        %1556 = vmatprep.subr.mxu0 0.0
        %1557 = vmatpush1.xpose.msra.mxu0 0.0
        %1558 = vmatprep.subr.mxu0 0.0
        %1559 = vmatpush1.xpose.msra.mxu0 0.0
        %1560 = vmatprep.subr.mxu0 0.0
        %1561 = vmatpush1.xpose.msra.mxu0 0.0
        %1562 = vmatprep.subr.mxu0 0.0
        %1563 = vmatpush1.xpose.msra.mxu0 0.0
        %1564 = vmatprep.subr.mxu0 0.0
        %1565 = vmatpush1.xpose.msra.mxu0 0.0
        %1566 = vmatprep.subr.mxu0 0.0
        %1567 = vmatpush1.xpose.msra.mxu0 0.0
        %1568 = vmatprep.subr.mxu0 0.0
        %1569 = vmatpush1.xpose.msra.mxu0 0.0
        %1570 = vmatprep.subr.mxu0 0.0
        %1571 = vmatpush1.xpose.msra.mxu0 0.0
        %1572 = vmatprep.subr.mxu0 0.0
        %1573 = vmatpush1.xpose.msra.mxu0 0.0
        %1574 = vmatprep.subr.mxu0 0.0
        %1575 = vmatpush1.xpose.msra.mxu0 0.0
        %1576 = vmatprep.subr.mxu0 0.0
        %1577 = vmatpush1.xpose.msra.mxu0 %v1544
        %1578 = vmatprep.subr.mxu0 0.0
        %1579 = vmatpush2.xpose.msra.mxu0 0.0
        %1580 = vmatprep.subr.mxu0 0.0
        %1581 = vmatpush2.xpose.msra.mxu0 0.0
        %1582 = vmatprep.subr.mxu0 0.0
        %1583 = vmatpush2.xpose.msra.mxu0 0.0
        %1584 = vmatprep.subr.mxu0 0.0
        %1585 = vmatpush2.xpose.msra.mxu0 0.0
        %1586 = vmatprep.subr.mxu0 0.0
        %1587 = vmatpush2.xpose.msra.mxu0 0.0
        %1588 = vmatprep.subr.mxu0 0.0
        %1589 = vmatpush2.xpose.msra.mxu0 0.0
        %1590 = vmatprep.subr.mxu0 0.0
        %1591 = vmatpush2.xpose.msra.mxu0 0.0
        %1592 = vmatprep.subr.mxu0 0.0
        %1593 = vmatpush2.xpose.msra.mxu0 0.0
        %1594 = vmatprep.subr.mxu0 0.0
        %1595 = vmatpush2.xpose.msra.mxu0 0.0
        %1596 = vmatprep.subr.mxu0 0.0
        %1597 = vmatpush2.xpose.msra.mxu0 0.0
        %1598 = vmatprep.subr.mxu0 0.0
        %1599 = vmatpush2.xpose.msra.mxu0 0.0
        %1600 = vmatprep.subr.mxu0 0.0
        %1601 = vmatpush2.xpose.msra.mxu0 0.0
        %1602 = vmatprep.subr.mxu0 0.0
        %1603 = vmatpush2.xpose.msra.mxu0 0.0
        %1604 = vmatprep.subr.mxu0 0.0
        %1605 = vmatpush2.xpose.msra.mxu0 0.0
        %1606 = vmatprep.subr.mxu0 0.0
        %1607 = vmatpush2.xpose.msra.mxu0 0.0
        %1608 = vmatprep.subr.mxu0 0.0
        %1609 = vmatpush2.xpose.msra.mxu0 0.0
        %1610 = vmatprep.mubr.f32.mxu0 0.0
        %1611 = vmatmul.mubr.f32.gmra.mxu0 %v1542
        %v1612 = vpop.f32.mrf.mxu0
        %v1613 = vadd.f32 0.0, %v1612
        %v1614 = vpop.f32.mrf.mxu0
        %1615 = vdwg.mxu0
        %v1616 = vmul.f32 %v1613, 0.5
        %v1617 = vsel %vm403, %v1616, -inf
        %1618 = vmax.xlane.f32.xlu0 %v1617
        %v1619 = vpop.xlane.xlu0 %1618
        %v1620 = vsub.f32 %v1616, %v1619
        %v1621 = vmul.f32 %v1620, 1.442695
        %v1622 = vpow.pop %v1621
        %v1623 = vsel %vm403, %v1622, 0.0
        %1624 = vadd.xlane.f32.xlu0 %v1623
        %v1625 = vpop.xlane.xlu0 %1624
        %v1626 = vrcp.pop %v1625
        %v1627 = vmul.f32 %v1622, %v1626
        %1628 = vrot.lane.b32.xlu0 %v1536, 36
        %v1629 = vpop.permute.xlu0 %1628
        %v1632 = vsel %vm403, %v1627, 0
        %1634 = vmatprep.subr.mxu0 0.0
        %1635 = vmatpush1.msra.mxu0 0.0
        %1636 = vmatprep.subr.mxu0 0.0
        %1637 = vmatpush1.msra.mxu0 0.0
        %1638 = vmatprep.subr.mxu0 0.0
        %1639 = vmatpush1.msra.mxu0 0.0
        %1640 = vmatprep.subr.mxu0 0.0
        %1641 = vmatpush1.msra.mxu0 0.0
        %1642 = vmatprep.subr.mxu0 0.0
        %1643 = vmatpush1.msra.mxu0 0.0
        %1644 = vmatprep.subr.mxu0 0.0
        %1645 = vmatpush1.msra.mxu0 0.0
        %1646 = vmatprep.subr.mxu0 0.0
        %1647 = vmatpush1.msra.mxu0 0.0
        %1648 = vmatprep.subr.mxu0 0.0
        %1649 = vmatpush1.msra.mxu0 0.0
        %1650 = vmatprep.subr.mxu0 0.0
        %1651 = vmatpush1.msra.mxu0 0.0
        %1652 = vmatprep.subr.mxu0 0.0
        %1653 = vmatpush1.msra.mxu0 0.0
        %1654 = vmatprep.subr.mxu0 0.0
        %1655 = vmatpush1.msra.mxu0 0.0
        %1656 = vmatprep.subr.mxu0 0.0
        %1657 = vmatpush1.msra.mxu0 0.0
        %1658 = vmatprep.subr.mxu0 0.0
        %1659 = vmatpush1.msra.mxu0 0.0
        %1660 = vmatprep.subr.mxu0 0.0
        %1661 = vmatpush1.msra.mxu0 0.0
        %1662 = vmatprep.subr.mxu0 0.0
        %1663 = vmatpush1.msra.mxu0 0.0
        %1664 = vmatprep.subr.mxu0 0.0
        %1665 = vmatpush1.msra.mxu0 %v1629
        %1666 = vmatprep.subr.mxu0 0.0
        %1667 = vmatpush2.msra.mxu0 0.0
        %1668 = vmatprep.subr.mxu0 0.0
        %1669 = vmatpush2.msra.mxu0 0.0
        %1670 = vmatprep.subr.mxu0 0.0
        %1671 = vmatpush2.msra.mxu0 0.0
        %1672 = vmatprep.subr.mxu0 0.0
        %1673 = vmatpush2.msra.mxu0 0.0
        %1674 = vmatprep.subr.mxu0 0.0
        %1675 = vmatpush2.msra.mxu0 0.0
        %1676 = vmatprep.subr.mxu0 0.0
        %1677 = vmatpush2.msra.mxu0 0.0
        %1678 = vmatprep.subr.mxu0 0.0
        %1679 = vmatpush2.msra.mxu0 0.0
        %1680 = vmatprep.subr.mxu0 0.0
        %1681 = vmatpush2.msra.mxu0 0.0
        %1682 = vmatprep.subr.mxu0 0.0
        %1683 = vmatpush2.msra.mxu0 0.0
        %1684 = vmatprep.subr.mxu0 0.0
        %1685 = vmatpush2.msra.mxu0 0.0
        %1686 = vmatprep.subr.mxu0 0.0
        %1687 = vmatpush2.msra.mxu0 0.0
        %1688 = vmatprep.subr.mxu0 0.0
        %1689 = vmatpush2.msra.mxu0 0.0
        %1690 = vmatprep.subr.mxu0 0.0
        %1691 = vmatpush2.msra.mxu0 0.0
        %1692 = vmatprep.subr.mxu0 0.0
        %1693 = vmatpush2.msra.mxu0 0.0
        %1694 = vmatprep.subr.mxu0 0.0
        %1695 = vmatpush2.msra.mxu0 0.0
        %1696 = vmatprep.subr.mxu0 0.0
        %1697 = vmatpush2.msra.mxu0 0.0
        %1698 = vmatprep.mubr.f32.mxu0 0.0
        %1699 = vmatmul.mubr.f32.gmra.mxu0 %v1632
        %v1700 = vpop.f32.mrf.mxu0
        %v1701 = vadd.f32 0.0, %v1700
        %v1702 = vpop.f32.mrf.mxu0
        %1703 = vdwg.mxu0
        %1705 = vrot.lane.b32.xlu0 %v1701, 28
        %v1706 = vpop.permute.xlu0 %1705
        %vm1708 = vcmask 261344
        %1709 = vst.msk [vmem:[#allocation3] sm:$0xff] %vm1708, %v1706
        %v1710 = vld [vmem:[#allocation3] sm:$0xff]
        %v1711 = vld [vmem:[#allocation9] sm:$0xff]
        %v1712 = vld [vmem:[#allocation9 + $0x8] sm:$0xff]
        %v1713 = vld [vmem:[#allocation9 + $0x10] sm:$0xff]
        %v1714 = vld [vmem:[#allocation9 + $0x18] sm:$0xff]
        %v1715 = vld [vmem:[%s3] sm:$0x1]
        %v1717 = vlaneseq
        %v1718 = vshrl.u32 %v1717, 7
        %v1719 = vsub.s32 0, %v1718
        %v1720 = vrot.slane %v1715, %v1719
        %v1723 = vsel %vm247, %v1710, 0
        %1725 = vmatprep.subr.mxu0 0.0
        %1726 = vmatpush1.msra.mxu0 0.0
        %1727 = vmatprep.subr.mxu0 0.0
        %1728 = vmatpush1.msra.mxu0 0.0
        %1729 = vmatprep.subr.mxu0 0.0
        %1730 = vmatpush1.msra.mxu0 0.0
        %1731 = vmatprep.subr.mxu0 0.0
        %1732 = vmatpush1.msra.mxu0 0.0
        %1733 = vmatprep.subr.mxu0 0.0
        %1734 = vmatpush1.msra.mxu0 0.0
        %1735 = vmatprep.subr.mxu0 0.0
        %1736 = vmatpush1.msra.mxu0 0.0
        %1737 = vmatprep.subr.mxu0 0.0
        %1738 = vmatpush1.msra.mxu0 0.0
        %1739 = vmatprep.subr.mxu0 0.0
        %1740 = vmatpush1.msra.mxu0 0.0
        %1741 = vmatprep.subr.mxu0 0.0
        %1742 = vmatpush1.msra.mxu0 0.0
        %1743 = vmatprep.subr.mxu0 0.0
        %1744 = vmatpush1.msra.mxu0 0.0
        %1745 = vmatprep.subr.mxu0 0.0
        %1746 = vmatpush1.msra.mxu0 0.0
        %1747 = vmatprep.subr.mxu0 0.0
        %1748 = vmatpush1.msra.mxu0 0.0
        %1749 = vmatprep.subr.mxu0 0.0
        %1750 = vmatpush1.msra.mxu0 %v1714
        %1751 = vmatprep.subr.mxu0 0.0
        %1752 = vmatpush1.msra.mxu0 %v1713
        %1753 = vmatprep.subr.mxu0 0.0
        %1754 = vmatpush1.msra.mxu0 %v1712
        %1755 = vmatprep.subr.mxu0 0.0
        %1756 = vmatpush1.msra.mxu0 %v1711
        %1757 = vmatprep.subr.mxu0 0.0
        %1758 = vmatpush2.msra.mxu0 0.0
        %1759 = vmatprep.subr.mxu0 0.0
        %1760 = vmatpush2.msra.mxu0 0.0
        %1761 = vmatprep.subr.mxu0 0.0
        %1762 = vmatpush2.msra.mxu0 0.0
        %1763 = vmatprep.subr.mxu0 0.0
        %1764 = vmatpush2.msra.mxu0 0.0
        %1765 = vmatprep.subr.mxu0 0.0
        %1766 = vmatpush2.msra.mxu0 0.0
        %1767 = vmatprep.subr.mxu0 0.0
        %1768 = vmatpush2.msra.mxu0 0.0
        %1769 = vmatprep.subr.mxu0 0.0
        %1770 = vmatpush2.msra.mxu0 0.0
        %1771 = vmatprep.subr.mxu0 0.0
        %1772 = vmatpush2.msra.mxu0 0.0
        %1773 = vmatprep.subr.mxu0 0.0
        %1774 = vmatpush2.msra.mxu0 0.0
        %1775 = vmatprep.subr.mxu0 0.0
        %1776 = vmatpush2.msra.mxu0 0.0
        %1777 = vmatprep.subr.mxu0 0.0
        %1778 = vmatpush2.msra.mxu0 0.0
        %1779 = vmatprep.subr.mxu0 0.0
        %1780 = vmatpush2.msra.mxu0 0.0
        %1781 = vmatprep.subr.mxu0 0.0
        %1782 = vmatpush2.msra.mxu0 0.0
        %1783 = vmatprep.subr.mxu0 0.0
        %1784 = vmatpush2.msra.mxu0 0.0
        %1785 = vmatprep.subr.mxu0 0.0
        %1786 = vmatpush2.msra.mxu0 0.0
        %1787 = vmatprep.subr.mxu0 0.0
        %1788 = vmatpush2.msra.mxu0 0.0
        %1789 = vmatprep.mubr.f32.mxu0 0.0
        %1790 = vmatmul.mubr.f32.gmra.mxu0 %v1723
        %v1791 = vpop.f32.mrf.mxu0
        %v1792 = vadd.f32 %v1720, %v1791
        %v1793 = vpop.f32.mrf.mxu0
        %1794 = vdwg.mxu0
        %1795 = vst.msk [vmem:[%s241] sm:$0xff] %vm247, %v1792
        %s1796 = sand.u32 %s119, 1
        %s1797 = scalar_lea.sflag [#allocation6], %s1796
        %s1798 = sand.u32 %s119, 1
        %s1799 = smul.addr %s1798, 8
        %s1800 = scalar_lea.vmem [#allocation10], %s1799
        // Predicated region
        $region49: #{tpu_custom_call.1} parent=35 // pred_check
          %p1801 = pneg %p129
        $region50: #{tpu_custom_call.1} parent=35 // pred_check_branch
          %1803 = sbr.rel (%p1801) target = $region52
        $region51: #{tpu_custom_call.1} parent=35 // pred_region
          %s1805 = ssub.s32 128, 128
          %1806 = vsyncadd %s1797, %s1805
          %s1807 = smul.addr %s22, 128
          %s1808 = scalar_lea.hbm %s4, %s1807
          %s1810 = sshll.u32 %s1800, 4
          %s1811 = int_to_ptr.vmem [resolvable:$true] %s1810
          %1813 = dma.vmem_to_hbm [thread:$0]  %s1811, 128, %s1808, %s1797
        $region52: #{tpu_custom_call.1} parent=35 // pred_fallthru
          _
      $region36: #{tpu_custom_call.1} parent=5 // pred_fallthru
        _
      %p1814 = scmp.le.s32.totalorder 2, %s17
      // Predicated region
      $region53: #{tpu_custom_call.1} parent=5 // pred_check
        %p1815 = pneg %p1814
      $region54: #{tpu_custom_call.1} parent=5 // pred_check_branch
        %1817 = sbr.rel (%p1815) target = $region56
      $region55: #{tpu_custom_call.1} parent=5 // pred_region
        %s1818 = ssub.s32 %s17, 2
        // Predicated region
        $region57: #{tpu_custom_call.1} parent=55 // pred_check
          %p1819 = pneg %p135
        $region58: #{tpu_custom_call.1} parent=55 // pred_check_branch
          %1821 = sbr.rel (%p1819) target = $region60
        $region59: #{tpu_custom_call.1} parent=55 // pred_region
          %s1822 = sand.u32 %s120, 1
          %s1823 = scalar_lea.sflag [#allocation6], %s1822
          %s1824 = sand.u32 %s120, 1
          %s1825 = smul.addr %s1824, 8
          %s1826 = scalar_lea.vmem [#allocation10], %s1825
          %1827 = dma.done %s1823, 128
        $region60: #{tpu_custom_call.1} parent=55 // pred_fallthru
          _
      $region56: #{tpu_custom_call.1} parent=5 // pred_fallthru
        _
    $region6: #{tpu_custom_call.1} parent=1 // loop_footer
      %s21 = sadd.s32 1, %s17
    $region7: #{tpu_custom_call.1} parent=1 // loop_footer_branch
      %16 = sbr.rel target = $region3
    $region8: #{tpu_custom_call.1} parent=1 // loop_exit
      _
    %1828 = vsyncpa [#allocation5], 1
    %s1829 = scalar_lea.sflag [#allocation5], 1
    %1830 = vsyncpa %s1829, 1
    %1831 = vsyncpa [#allocation8], 1
    %1832 = vsyncpa [#allocation6], 1
    %s1833 = scalar_lea.sflag [#allocation6], 1
    %1834 = vsyncpa %s1833, 1

</llo_original>
